<compile_context>
chip_gen: v6e
topology: v6e:2x2x1
jax: 0.10.0
libtpu: 0.0.40
codegen_flags: <defaults>
</compile_context>

<pallas_src>
import functools
import math

import jax
import jax.numpy as jnp
import numpy as np
from jax.experimental import pallas as pl
from jax.experimental.pallas import tpu as pltpu


def _erf_f32(x):
    # Eigen/XLA f32 rational approximation of erf; only mul/add/div/clip
    # (all VPU-native; no reliance on a lax.erf Mosaic lowering).
    x = jnp.clip(x, jnp.float32(-4.0), jnp.float32(4.0))
    x2 = x * x
    a = jnp.float32(-2.72614225801306e-10)
    a = a * x2 + jnp.float32(2.77068142495902e-08)
    a = a * x2 + jnp.float32(-2.10102402082508e-06)
    a = a * x2 + jnp.float32(-5.69250639462346e-05)
    a = a * x2 + jnp.float32(-7.34990630326855e-04)
    a = a * x2 + jnp.float32(-2.95459980854025e-03)
    a = a * x2 + jnp.float32(-1.60960333262415e-02)
    a = a * x
    b = jnp.float32(-9.18466545861655e-09)
    b = b * x2 + jnp.float32(-4.86705197646755e-07)
    b = b * x2 + jnp.float32(-1.45660718464996e-05)
    b = b * x2 + jnp.float32(-2.13374055278905e-04)
    b = b * x2 + jnp.float32(-1.68282697438203e-03)
    b = b * x2 + jnp.float32(-7.37332916720468e-03)
    b = b * x2 + jnp.float32(-1.42647390514189e-02)
    return a / b


def _gelu_exact(x):
    # PyTorch nn.GELU() default ('none'): 0.5 * x * (1 + erf(x / sqrt(2))), f32.
    return jnp.float32(0.5) * x * (jnp.float32(1.0) +
                                   _erf_f32(x * jnp.float32(0.7071067811865476)))


def _distogram_kernel(xa_ref, xb_ref, g_ref, bln_ref, wi_ref, bi_ref,
                      wo_ref, bo_ref, o_ref):
    # xa_ref: (1, ti, tj, C)  rows x[b, i_tile, j_tile, :]
    # xb_ref: (1, tj, ti, C)  rows x[b, j_tile, i_tile, :]  (transposed tile)
    # o_ref : (1, ti, tj, NB) symmetrized logits block
    _, ti, tj, C = xa_ref.shape
    nb = o_ref.shape[-1]

    g, bln = g_ref[...], bln_ref[...]          # (1, C) f32
    wi, wo = wi_ref[...], wo_ref[...]          # bf16 weights (C, C) / (C, NB)
    bi, bo = bi_ref[...], bo_ref[...]          # (1, C) / (1, NB) f32

    def head(rows):                            # rows: (R, C) f32 -> (R, NB) f32
        mu = jnp.mean(rows, axis=-1, keepdims=True)
        xc = rows - mu
        var = jnp.mean(xc * xc, axis=-1, keepdims=True)
        xn = xc * jax.lax.rsqrt(var + jnp.float32(1e-5))      # LayerNorm eps=1e-5
        xn = xn * g + bln
        h = jnp.dot(xn.astype(jnp.bfloat16), wi,
                    preferred_element_type=jnp.float32) + bi  # MXU bf16xbf16->f32
        h = _gelu_exact(h)                                    # f32 on VPU/EUP
        return jnp.dot(h.astype(jnp.bfloat16), wo,
                       preferred_element_type=jnp.float32) + bo

    # Major-dim-only reshapes (tj, ti are multiples of 8 -> layout no-ops).
    la = head(xa_ref[0].astype(jnp.float32).reshape(ti * tj, C)).reshape(ti, tj, nb)
    lb = head(xb_ref[0].astype(jnp.float32).reshape(tj * ti, C)).reshape(tj, ti, nb)

    # out[i, j, :] = logits[i, j, :] + logits[j, i, :]
    # ti is a small constant (8 by default), so this static unroll stays tiny
    # for any sequence length (unlike an N-way unrolled symmetrization kernel).
    for i in range(ti):
        o_ref[0, i, :, :] = (la[i] + lb[:, i, :]).astype(o_ref.dtype)


def _round_up(a, m):
    return (a + m - 1) // m * m


def distogram_head(x, params, *, ti=8, tj=128):
    """x: [B, N, N, C] f32 -> symmetrized distogram logits [B, N, N, num_bins]."""
    B, N, N2, C = x.shape
    assert N == N2, "pair representation must be square over the residue axes"
    NB = params["w_out"].shape[1]

    # Second-to-last block dims must be multiples of 8 sublanes.
    ti = _round_up(max(int(ti), 1), 8)
    tj = _round_up(max(int(tj), 1), 8)
    # Pad residue axes so both tile sizes divide the padded length (arbitrary N).
    lcm = ti * tj // math.gcd(ti, tj)
    Np = _round_up(N, lcm)
    if Np != N:
        x = jnp.pad(x, ((0, 0), (0, Np - N), (0, Np - N), (0, 0)))

    # bf16 MXU operands (f32 accumulate); LN / bias params stay f32.
    w_in = params["w_in"].astype(jnp.bfloat16)
    w_out = params["w_out"].astype(jnp.bfloat16)

    grid = (B, Np // ti, Np // tj)
    out = pl.pallas_call(
        _distogram_kernel,
        out_shape=jax.ShapeDtypeStruct((B, Np, Np, NB), x.dtype),
        grid=grid,
        in_specs=[
            pl.BlockSpec((1, ti, tj, C), lambda b, i, j: (b, i, j, 0)),  # x[b,i,j]
            pl.BlockSpec((1, tj, ti, C), lambda b, i, j: (b, j, i, 0)),  # x[b,j,i]
            pl.BlockSpec((1, C), lambda b, i, j: (0, 0)),                # ln gamma
            pl.BlockSpec((1, C), lambda b, i, j: (0, 0)),                # ln beta
            pl.BlockSpec((C, C), lambda b, i, j: (0, 0)),                # w_in (bf16)
            pl.BlockSpec((1, C), lambda b, i, j: (0, 0)),                # b_in
            pl.BlockSpec((C, NB), lambda b, i, j: (0, 0)),               # w_out (bf16)
            pl.BlockSpec((1, NB), lambda b, i, j: (0, 0)),               # b_out
        ],
        out_specs=pl.BlockSpec((1, ti, tj, NB), lambda b, i, j: (b, i, j, 0)),
        compiler_params=pltpu.CompilerParams(
            dimension_semantics=("parallel", "parallel", "parallel")),
    )(x, x, params["ln_g"], params["ln_b"], w_in, params["b_in"],
      w_out, params["b_out"])

    if Np != N:
        out = out[:, :N, :N, :]
    return out


def reference(x, params):
    # Pure-JAX f32 reference of the PyTorch forward pass (exact GELU).
    mu = jnp.mean(x, axis=-1, keepdims=True)
    var = jnp.mean((x - mu) ** 2, axis=-1, keepdims=True)
    xn = (x - mu) * jax.lax.rsqrt(var + 1e-5) * params["ln_g"][0] + params["ln_b"][0]
    h = jnp.einsum("bijc,cd->bijd", xn, params["w_in"],
                   precision=jax.lax.Precision.HIGHEST) + params["b_in"][0]
    h = jax.nn.gelu(h, approximate=False)
    y = jnp.einsum("bijc,cd->bijd", h, params["w_out"],
                   precision=jax.lax.Precision.HIGHEST) + params["b_out"][0]
    return y + jnp.swapaxes(y, -2, -3)


if __name__ == "__main__":
    B, N, C, NB = 2, 16, 32, 16  # batch, residues, d_pair, num_bins (small test)

    key = jax.random.PRNGKey(0)
    kx, k1, k2, k3, k4, k5, k6 = jax.random.split(key, 7)
    x = jax.random.normal(kx, (B, N, N, C), jnp.float32)

    # Synthetic parameters with the module's shapes:
    # LayerNorm(d_pair), Linear(d_pair, d_pair), Linear(d_pair, num_bins).
    params = {
        "ln_g": 1.0 + 0.1 * jax.random.normal(k1, (1, C), jnp.float32),
        "ln_b": 0.1 * jax.random.normal(k2, (1, C), jnp.float32),
        "w_in": jax.random.normal(k3, (C, C), jnp.float32) / np.sqrt(C),
        "b_in": 0.1 * jax.random.normal(k4, (1, C), jnp.float32),
        "w_out": jax.random.normal(k5, (C, NB), jnp.float32) / np.sqrt(C),
        "b_out": 0.1 * jax.random.normal(k6, (1, NB), jnp.float32),
    }

    # Small tiles for the toy shape so the (b, i, j) grid (2,2,2) is exercised;
    # realistic d_pair=128 / num_bins=64 runs would use the defaults ti=8, tj=128.
    fwd = jax.jit(functools.partial(distogram_head, ti=8, tj=8))
    out = jax.block_until_ready(fwd(x, params))
    ref = jax.block_until_ready(reference(x, params))

    assert out.shape == (B, N, N, NB) and out.dtype == jnp.float32
    out_np, ref_np = np.asarray(out), np.asarray(ref)
    # Tolerances sized for bf16 MXU operands with f32 accumulation vs the f32
    # reference (elementwise LayerNorm/GELU math is f32 in both).
    np.testing.assert_allclose(out_np, ref_np, rtol=5e-2, atol=7e-2)
    rel_fro = np.linalg.norm(out_np - ref_np) / np.linalg.norm(ref_np)
    assert rel_fro < 2e-2, f"relative Frobenius error too large: {rel_fro}"

    print("KERNEL_OK")
</pallas_src>

<mosaic_0001>
module attributes {stable_mosaic.version = 11 : i64} {
  func.func @_distogram_kernel(%arg0: i32, %arg1: i32, %arg2: i32, %arg3: memref<1x8x8x32xf32, #tpu.memory_space<vmem>>, %arg4: memref<1x8x8x32xf32, #tpu.memory_space<vmem>>, %arg5: memref<1x32xf32, #tpu.memory_space<vmem>>, %arg6: memref<1x32xf32, #tpu.memory_space<vmem>>, %arg7: memref<32x32xbf16, #tpu.memory_space<vmem>>, %arg8: memref<1x32xf32, #tpu.memory_space<vmem>>, %arg9: memref<32x16xbf16, #tpu.memory_space<vmem>>, %arg10: memref<1x16xf32, #tpu.memory_space<vmem>>, %arg11: memref<1x8x8x16xf32, #tpu.memory_space<vmem>>) attributes {dimension_semantics = [#tpu.dimension_semantics<parallel>, #tpu.dimension_semantics<parallel>, #tpu.dimension_semantics<parallel>], iteration_bounds = array<i64: 2, 2, 2>, scalar_prefetch = 0 : i64, scratch_operands = 0 : i64, tpu.core_type = #tpu.core_type<tc>, window_params = [{transform_indices = @transform_0, window_bounds = array<i64: 1, 8, 8, 32>}, {transform_indices = @transform_1, window_bounds = array<i64: 1, 8, 8, 32>}, {pipeline_mode = #tpu.pipeline_mode<synchronous>, transform_indices = @transform_2, window_bounds = array<i64: 1, 32>}, {pipeline_mode = #tpu.pipeline_mode<synchronous>, transform_indices = @transform_3, window_bounds = array<i64: 1, 32>}, {pipeline_mode = #tpu.pipeline_mode<synchronous>, transform_indices = @transform_4, window_bounds = array<i64: 32, 32>}, {pipeline_mode = #tpu.pipeline_mode<synchronous>, transform_indices = @transform_5, window_bounds = array<i64: 1, 32>}, {pipeline_mode = #tpu.pipeline_mode<synchronous>, transform_indices = @transform_6, window_bounds = array<i64: 32, 16>}, {pipeline_mode = #tpu.pipeline_mode<synchronous>, transform_indices = @transform_7, window_bounds = array<i64: 1, 16>}, {transform_indices = @transform_8, window_bounds = array<i64: 1, 8, 8, 16>}]} {
    %c0 = arith.constant 0 : index
    %c0_0 = arith.constant 0 : index
    %0 = vector.load %arg5[%c0, %c0_0] : memref<1x32xf32, #tpu.memory_space<vmem>>, vector<1x32xf32>
    %c0_1 = arith.constant 0 : index
    %c0_2 = arith.constant 0 : index
    %1 = vector.load %arg6[%c0_1, %c0_2] : memref<1x32xf32, #tpu.memory_space<vmem>>, vector<1x32xf32>
    %c0_3 = arith.constant 0 : index
    %c0_4 = arith.constant 0 : index
    %2 = vector.load %arg7[%c0_3, %c0_4] : memref<32x32xbf16, #tpu.memory_space<vmem>>, vector<32x32xbf16>
    %c0_5 = arith.constant 0 : index
    %c0_6 = arith.constant 0 : index
    %3 = vector.load %arg9[%c0_5, %c0_6] : memref<32x16xbf16, #tpu.memory_space<vmem>>, vector<32x16xbf16>
    %c0_7 = arith.constant 0 : index
    %c0_8 = arith.constant 0 : index
    %4 = vector.load %arg8[%c0_7, %c0_8] : memref<1x32xf32, #tpu.memory_space<vmem>>, vector<1x32xf32>
    %c0_9 = arith.constant 0 : index
    %c0_10 = arith.constant 0 : index
    %5 = vector.load %arg10[%c0_9, %c0_10] : memref<1x16xf32, #tpu.memory_space<vmem>>, vector<1x16xf32>
    %c0_11 = arith.constant 0 : index
    %c0_12 = arith.constant 0 : index
    %c0_13 = arith.constant 0 : index
    %c0_14 = arith.constant 0 : index
    %6 = vector.load %arg3[%c0_11, %c0_12, %c0_13, %c0_14] : memref<1x8x8x32xf32, #tpu.memory_space<vmem>>, vector<1x8x8x32xf32>
    %7 = vector.shape_cast %6 : vector<1x8x8x32xf32> to vector<8x8x32xf32>
    %8 = vector.shape_cast %7 : vector<8x8x32xf32> to vector<64x32xf32>
    %cst = arith.constant dense<0.000000e+00> : vector<64xf32>
    %9 = vector.multi_reduction <add>, %8, %cst [1] : vector<64x32xf32> to vector<64xf32>
    %10 = vector.shape_cast %9 : vector<64xf32> to vector<64x1xf32>
    %cst_15 = arith.constant 3.200000e+01 : f32
    %11 = vector.broadcast %cst_15 : f32 to vector<64x1xf32>
    %12 = arith.divf %10, %11 : vector<64x1xf32>
    %13 = vector.broadcast %12 : vector<64x1xf32> to vector<64x32xf32>
    %14 = arith.subf %8, %13 : vector<64x32xf32>
    %15 = arith.mulf %14, %14 : vector<64x32xf32>
    %cst_16 = arith.constant dense<0.000000e+00> : vector<64xf32>
    %16 = vector.multi_reduction <add>, %15, %cst_16 [1] : vector<64x32xf32> to vector<64xf32>
    %17 = vector.shape_cast %16 : vector<64xf32> to vector<64x1xf32>
    %cst_17 = arith.constant 3.200000e+01 : f32
    %18 = vector.broadcast %cst_17 : f32 to vector<64x1xf32>
    %19 = arith.divf %17, %18 : vector<64x1xf32>
    %cst_18 = arith.constant 9.99999974E-6 : f32
    %20 = vector.broadcast %cst_18 : f32 to vector<64x1xf32>
    %21 = arith.addf %19, %20 : vector<64x1xf32>
    %22 = math.rsqrt %21 : vector<64x1xf32>
    %23 = vector.broadcast %22 : vector<64x1xf32> to vector<64x32xf32>
    %24 = arith.mulf %14, %23 : vector<64x32xf32>
    %25 = vector.broadcast %0 : vector<1x32xf32> to vector<64x32xf32>
    %26 = arith.mulf %24, %25 : vector<64x32xf32>
    %27 = vector.broadcast %1 : vector<1x32xf32> to vector<64x32xf32>
    %28 = arith.addf %26, %27 : vector<64x32xf32>
    %29 = arith.truncf %28 : vector<64x32xf32> to vector<64x32xbf16>
    %cst_19 = arith.constant dense<0.000000e+00> : vector<64x32xf32>
    %30 = tpu.matmul %29, %2, %cst_19 {dimension_numbers = #tpu.dot_dimension_numbers<[1], [0], [0], [1], [0, 0, 1, 1], [], []>} : vector<64x32xbf16>, vector<32x32xbf16>, vector<64x32xf32> -> vector<64x32xf32>
    %31 = vector.broadcast %4 : vector<1x32xf32> to vector<64x32xf32>
    %32 = arith.addf %30, %31 : vector<64x32xf32>
    %cst_20 = arith.constant 5.000000e-01 : f32
    %33 = vector.broadcast %cst_20 : f32 to vector<64x32xf32>
    %34 = arith.mulf %33, %32 : vector<64x32xf32>
    %cst_21 = arith.constant 0.707106769 : f32
    %35 = vector.broadcast %cst_21 : f32 to vector<64x32xf32>
    %36 = arith.mulf %32, %35 : vector<64x32xf32>
    %cst_22 = arith.constant -4.000000e+00 : f32
    %cst_23 = arith.constant 4.000000e+00 : f32
    %37 = vector.broadcast %cst_22 : f32 to vector<64x32xf32>
    %38 = arith.maximumf %37, %36 : vector<64x32xf32>
    %39 = vector.broadcast %cst_23 : f32 to vector<64x32xf32>
    %40 = arith.minimumf %39, %38 : vector<64x32xf32>
    %41 = arith.mulf %40, %40 : vector<64x32xf32>
    %cst_24 = arith.constant -2.72614237E-10 : f32
    %42 = vector.broadcast %cst_24 : f32 to vector<64x32xf32>
    %43 = arith.mulf %42, %41 : vector<64x32xf32>
    %cst_25 = arith.constant 2.77068146E-8 : f32
    %44 = vector.broadcast %cst_25 : f32 to vector<64x32xf32>
    %45 = arith.addf %43, %44 : vector<64x32xf32>
    %46 = arith.mulf %45, %41 : vector<64x32xf32>
    %cst_26 = arith.constant -2.10102394E-6 : f32
    %47 = vector.broadcast %cst_26 : f32 to vector<64x32xf32>
    %48 = arith.addf %46, %47 : vector<64x32xf32>
    %49 = arith.mulf %48, %41 : vector<64x32xf32>
    %cst_27 = arith.constant -5.69250624E-5 : f32
    %50 = vector.broadcast %cst_27 : f32 to vector<64x32xf32>
    %51 = arith.addf %49, %50 : vector<64x32xf32>
    %52 = arith.mulf %51, %41 : vector<64x32xf32>
    %cst_28 = arith.constant -7.34990637E-4 : f32
    %53 = vector.broadcast %cst_28 : f32 to vector<64x32xf32>
    %54 = arith.addf %52, %53 : vector<64x32xf32>
    %55 = arith.mulf %54, %41 : vector<64x32xf32>
    %cst_29 = arith.constant -2.954600e-03 : f32
    %56 = vector.broadcast %cst_29 : f32 to vector<64x32xf32>
    %57 = arith.addf %55, %56 : vector<64x32xf32>
    %58 = arith.mulf %57, %41 : vector<64x32xf32>
    %cst_30 = arith.constant -0.0160960332 : f32
    %59 = vector.broadcast %cst_30 : f32 to vector<64x32xf32>
    %60 = arith.addf %58, %59 : vector<64x32xf32>
    %61 = arith.mulf %60, %40 : vector<64x32xf32>
    %cst_31 = arith.constant -9.18466547E-9 : f32
    %62 = vector.broadcast %cst_31 : f32 to vector<64x32xf32>
    %63 = arith.mulf %62, %41 : vector<64x32xf32>
    %cst_32 = arith.constant -4.86705176E-7 : f32
    %64 = vector.broadcast %cst_32 : f32 to vector<64x32xf32>
    %65 = arith.addf %63, %64 : vector<64x32xf32>
    %66 = arith.mulf %65, %41 : vector<64x32xf32>
    %cst_33 = arith.constant -1.45660715E-5 : f32
    %67 = vector.broadcast %cst_33 : f32 to vector<64x32xf32>
    %68 = arith.addf %66, %67 : vector<64x32xf32>
    %69 = arith.mulf %68, %41 : vector<64x32xf32>
    %cst_34 = arith.constant -2.13374049E-4 : f32
    %70 = vector.broadcast %cst_34 : f32 to vector<64x32xf32>
    %71 = arith.addf %69, %70 : vector<64x32xf32>
    %72 = arith.mulf %71, %41 : vector<64x32xf32>
    %cst_35 = arith.constant -0.00168282702 : f32
    %73 = vector.broadcast %cst_35 : f32 to vector<64x32xf32>
    %74 = arith.addf %72, %73 : vector<64x32xf32>
    %75 = arith.mulf %74, %41 : vector<64x32xf32>
    %cst_36 = arith.constant -0.00737332925 : f32
    %76 = vector.broadcast %cst_36 : f32 to vector<64x32xf32>
    %77 = arith.addf %75, %76 : vector<64x32xf32>
    %78 = arith.mulf %77, %41 : vector<64x32xf32>
    %cst_37 = arith.constant -0.0142647391 : f32
    %79 = vector.broadcast %cst_37 : f32 to vector<64x32xf32>
    %80 = arith.addf %78, %79 : vector<64x32xf32>
    %81 = arith.divf %61, %80 : vector<64x32xf32>
    %cst_38 = arith.constant 1.000000e+00 : f32
    %82 = vector.broadcast %cst_38 : f32 to vector<64x32xf32>
    %83 = arith.addf %82, %81 : vector<64x32xf32>
    %84 = arith.mulf %34, %83 : vector<64x32xf32>
    %85 = arith.truncf %84 : vector<64x32xf32> to vector<64x32xbf16>
    %cst_39 = arith.constant dense<0.000000e+00> : vector<64x16xf32>
    %86 = tpu.matmul %85, %3, %cst_39 {dimension_numbers = #tpu.dot_dimension_numbers<[1], [0], [0], [1], [0, 0, 1, 1], [], []>} : vector<64x32xbf16>, vector<32x16xbf16>, vector<64x16xf32> -> vector<64x16xf32>
    %87 = vector.broadcast %5 : vector<1x16xf32> to vector<64x16xf32>
    %88 = arith.addf %86, %87 : vector<64x16xf32>
    %89 = vector.shape_cast %88 : vector<64x16xf32> to vector<8x8x16xf32>
    %c0_40 = arith.constant 0 : index
    %c0_41 = arith.constant 0 : index
    %c0_42 = arith.constant 0 : index
    %c0_43 = arith.constant 0 : index
    %90 = vector.load %arg4[%c0_40, %c0_41, %c0_42, %c0_43] : memref<1x8x8x32xf32, #tpu.memory_space<vmem>>, vector<1x8x8x32xf32>
    %91 = vector.shape_cast %90 : vector<1x8x8x32xf32> to vector<8x8x32xf32>
    %92 = vector.shape_cast %91 : vector<8x8x32xf32> to vector<64x32xf32>
    %cst_44 = arith.constant dense<0.000000e+00> : vector<64xf32>
    %93 = vector.multi_reduction <add>, %92, %cst_44 [1] : vector<64x32xf32> to vector<64xf32>
    %94 = vector.shape_cast %93 : vector<64xf32> to vector<64x1xf32>
    %cst_45 = arith.constant 3.200000e+01 : f32
    %95 = vector.broadcast %cst_45 : f32 to vector<64x1xf32>
    %96 = arith.divf %94, %95 : vector<64x1xf32>
    %97 = vector.broadcast %96 : vector<64x1xf32> to vector<64x32xf32>
    %98 = arith.subf %92, %97 : vector<64x32xf32>
    %99 = arith.mulf %98, %98 : vector<64x32xf32>
    %cst_46 = arith.constant dense<0.000000e+00> : vector<64xf32>
    %100 = vector.multi_reduction <add>, %99, %cst_46 [1] : vector<64x32xf32> to vector<64xf32>
    %101 = vector.shape_cast %100 : vector<64xf32> to vector<64x1xf32>
    %cst_47 = arith.constant 3.200000e+01 : f32
    %102 = vector.broadcast %cst_47 : f32 to vector<64x1xf32>
    %103 = arith.divf %101, %102 : vector<64x1xf32>
    %cst_48 = arith.constant 9.99999974E-6 : f32
    %104 = vector.broadcast %cst_48 : f32 to vector<64x1xf32>
    %105 = arith.addf %103, %104 : vector<64x1xf32>
    %106 = math.rsqrt %105 : vector<64x1xf32>
    %107 = vector.broadcast %106 : vector<64x1xf32> to vector<64x32xf32>
    %108 = arith.mulf %98, %107 : vector<64x32xf32>
    %109 = vector.broadcast %0 : vector<1x32xf32> to vector<64x32xf32>
    %110 = arith.mulf %108, %109 : vector<64x32xf32>
    %111 = vector.broadcast %1 : vector<1x32xf32> to vector<64x32xf32>
    %112 = arith.addf %110, %111 : vector<64x32xf32>
    %113 = arith.truncf %112 : vector<64x32xf32> to vector<64x32xbf16>
    %cst_49 = arith.constant dense<0.000000e+00> : vector<64x32xf32>
    %114 = tpu.matmul %113, %2, %cst_49 {dimension_numbers = #tpu.dot_dimension_numbers<[1], [0], [0], [1], [0, 0, 1, 1], [], []>} : vector<64x32xbf16>, vector<32x32xbf16>, vector<64x32xf32> -> vector<64x32xf32>
    %115 = vector.broadcast %4 : vector<1x32xf32> to vector<64x32xf32>
    %116 = arith.addf %114, %115 : vector<64x32xf32>
    %cst_50 = arith.constant 5.000000e-01 : f32
    %117 = vector.broadcast %cst_50 : f32 to vector<64x32xf32>
    %118 = arith.mulf %117, %116 : vector<64x32xf32>
    %cst_51 = arith.constant 0.707106769 : f32
    %119 = vector.broadcast %cst_51 : f32 to vector<64x32xf32>
    %120 = arith.mulf %116, %119 : vector<64x32xf32>
    %cst_52 = arith.constant -4.000000e+00 : f32
    %cst_53 = arith.constant 4.000000e+00 : f32
    %121 = vector.broadcast %cst_52 : f32 to vector<64x32xf32>
    %122 = arith.maximumf %121, %120 : vector<64x32xf32>
    %123 = vector.broadcast %cst_53 : f32 to vector<64x32xf32>
    %124 = arith.minimumf %123, %122 : vector<64x32xf32>
    %125 = arith.mulf %124, %124 : vector<64x32xf32>
    %cst_54 = arith.constant -2.72614237E-10 : f32
    %126 = vector.broadcast %cst_54 : f32 to vector<64x32xf32>
    %127 = arith.mulf %126, %125 : vector<64x32xf32>
    %cst_55 = arith.constant 2.77068146E-8 : f32
    %128 = vector.broadcast %cst_55 : f32 to vector<64x32xf32>
    %129 = arith.addf %127, %128 : vector<64x32xf32>
    %130 = arith.mulf %129, %125 : vector<64x32xf32>
    %cst_56 = arith.constant -2.10102394E-6 : f32
    %131 = vector.broadcast %cst_56 : f32 to vector<64x32xf32>
    %132 = arith.addf %130, %131 : vector<64x32xf32>
    %133 = arith.mulf %132, %125 : vector<64x32xf32>
    %cst_57 = arith.constant -5.69250624E-5 : f32
    %134 = vector.broadcast %cst_57 : f32 to vector<64x32xf32>
    %135 = arith.addf %133, %134 : vector<64x32xf32>
    %136 = arith.mulf %135, %125 : vector<64x32xf32>
    %cst_58 = arith.constant -7.34990637E-4 : f32
    %137 = vector.broadcast %cst_58 : f32 to vector<64x32xf32>
    %138 = arith.addf %136, %137 : vector<64x32xf32>
    %139 = arith.mulf %138, %125 : vector<64x32xf32>
    %cst_59 = arith.constant -2.954600e-03 : f32
    %140 = vector.broadcast %cst_59 : f32 to vector<64x32xf32>
    %141 = arith.addf %139, %140 : vector<64x32xf32>
    %142 = arith.mulf %141, %125 : vector<64x32xf32>
    %cst_60 = arith.constant -0.0160960332 : f32
    %143 = vector.broadcast %cst_60 : f32 to vector<64x32xf32>
    %144 = arith.addf %142, %143 : vector<64x32xf32>
    %145 = arith.mulf %144, %124 : vector<64x32xf32>
    %cst_61 = arith.constant -9.18466547E-9 : f32
    %146 = vector.broadcast %cst_61 : f32 to vector<64x32xf32>
    %147 = arith.mulf %146, %125 : vector<64x32xf32>
    %cst_62 = arith.constant -4.86705176E-7 : f32
    %148 = vector.broadcast %cst_62 : f32 to vector<64x32xf32>
    %149 = arith.addf %147, %148 : vector<64x32xf32>
    %150 = arith.mulf %149, %125 : vector<64x32xf32>
    %cst_63 = arith.constant -1.45660715E-5 : f32
    %151 = vector.broadcast %cst_63 : f32 to vector<64x32xf32>
    %152 = arith.addf %150, %151 : vector<64x32xf32>
    %153 = arith.mulf %152, %125 : vector<64x32xf32>
    %cst_64 = arith.constant -2.13374049E-4 : f32
    %154 = vector.broadcast %cst_64 : f32 to vector<64x32xf32>
    %155 = arith.addf %153, %154 : vector<64x32xf32>
    %156 = arith.mulf %155, %125 : vector<64x32xf32>
    %cst_65 = arith.constant -0.00168282702 : f32
    %157 = vector.broadcast %cst_65 : f32 to vector<64x32xf32>
    %158 = arith.addf %156, %157 : vector<64x32xf32>
    %159 = arith.mulf %158, %125 : vector<64x32xf32>
    %cst_66 = arith.constant -0.00737332925 : f32
    %160 = vector.broadcast %cst_66 : f32 to vector<64x32xf32>
    %161 = arith.addf %159, %160 : vector<64x32xf32>
    %162 = arith.mulf %161, %125 : vector<64x32xf32>
    %cst_67 = arith.constant -0.0142647391 : f32
    %163 = vector.broadcast %cst_67 : f32 to vector<64x32xf32>
    %164 = arith.addf %162, %163 : vector<64x32xf32>
    %165 = arith.divf %145, %164 : vector<64x32xf32>
    %cst_68 = arith.constant 1.000000e+00 : f32
    %166 = vector.broadcast %cst_68 : f32 to vector<64x32xf32>
    %167 = arith.addf %166, %165 : vector<64x32xf32>
    %168 = arith.mulf %118, %167 : vector<64x32xf32>
    %169 = arith.truncf %168 : vector<64x32xf32> to vector<64x32xbf16>
    %cst_69 = arith.constant dense<0.000000e+00> : vector<64x16xf32>
    %170 = tpu.matmul %169, %3, %cst_69 {dimension_numbers = #tpu.dot_dimension_numbers<[1], [0], [0], [1], [0, 0, 1, 1], [], []>} : vector<64x32xbf16>, vector<32x16xbf16>, vector<64x16xf32> -> vector<64x16xf32>
    %171 = vector.broadcast %5 : vector<1x16xf32> to vector<64x16xf32>
    %172 = arith.addf %170, %171 : vector<64x16xf32>
    %173 = vector.shape_cast %172 : vector<64x16xf32> to vector<8x8x16xf32>
    %174 = vector.extract_strided_slice %89 {offsets = [0, 0, 0], sizes = [1, 8, 16], strides = [1, 1, 1]} : vector<8x8x16xf32> to vector<1x8x16xf32>
    %175 = vector.shape_cast %174 : vector<1x8x16xf32> to vector<8x16xf32>
    %176 = vector.extract_strided_slice %173 {offsets = [0, 0, 0], sizes = [8, 1, 16], strides = [1, 1, 1]} : vector<8x8x16xf32> to vector<8x1x16xf32>
    %177 = vector.shape_cast %176 : vector<8x1x16xf32> to vector<8x16xf32>
    %178 = arith.addf %175, %177 : vector<8x16xf32>
    %c0_70 = arith.constant 0 : index
    %c0_71 = arith.constant 0 : index
    %c0_72 = arith.constant 0 : index
    %c0_73 = arith.constant 0 : index
    %179 = vector.load %arg11[%c0_70, %c0_71, %c0_72, %c0_73] : memref<1x8x8x16xf32, #tpu.memory_space<vmem>>, vector<1x1x8x16xf32>
    %180 = vector.shape_cast %179 : vector<1x1x8x16xf32> to vector<8x16xf32>
    %181 = vector.shape_cast %178 : vector<8x16xf32> to vector<1x1x8x16xf32>
    tpu.vector_store %arg11[%c0_70, %c0_71, %c0_72, %c0_73], %181 {strides = array<i32>} : memref<1x8x8x16xf32, #tpu.memory_space<vmem>>, vector<1x1x8x16xf32>,
    %182 = vector.extract_strided_slice %89 {offsets = [1, 0, 0], sizes = [1, 8, 16], strides = [1, 1, 1]} : vector<8x8x16xf32> to vector<1x8x16xf32>
    %183 = vector.shape_cast %182 : vector<1x8x16xf32> to vector<8x16xf32>
    %184 = vector.extract_strided_slice %173 {offsets = [0, 1, 0], sizes = [8, 1, 16], strides = [1, 1, 1]} : vector<8x8x16xf32> to vector<8x1x16xf32>
    %185 = vector.shape_cast %184 : vector<8x1x16xf32> to vector<8x16xf32>
    %186 = arith.addf %183, %185 : vector<8x16xf32>
    %c0_74 = arith.constant 0 : index
    %c1 = arith.constant 1 : index
    %c0_75 = arith.constant 0 : index
    %c0_76 = arith.constant 0 : index
    %187 = vector.load %arg11[%c0_74, %c1, %c0_75, %c0_76] : memref<1x8x8x16xf32, #tpu.memory_space<vmem>>, vector<1x1x8x16xf32>
    %188 = vector.shape_cast %187 : vector<1x1x8x16xf32> to vector<8x16xf32>
    %189 = vector.shape_cast %186 : vector<8x16xf32> to vector<1x1x8x16xf32>
    tpu.vector_store %arg11[%c0_74, %c1, %c0_75, %c0_76], %189 {strides = array<i32>} : memref<1x8x8x16xf32, #tpu.memory_space<vmem>>, vector<1x1x8x16xf32>,
    %190 = vector.extract_strided_slice %89 {offsets = [2, 0, 0], sizes = [1, 8, 16], strides = [1, 1, 1]} : vector<8x8x16xf32> to vector<1x8x16xf32>
    %191 = vector.shape_cast %190 : vector<1x8x16xf32> to vector<8x16xf32>
    %192 = vector.extract_strided_slice %173 {offsets = [0, 2, 0], sizes = [8, 1, 16], strides = [1, 1, 1]} : vector<8x8x16xf32> to vector<8x1x16xf32>
    %193 = vector.shape_cast %192 : vector<8x1x16xf32> to vector<8x16xf32>
    %194 = arith.addf %191, %193 : vector<8x16xf32>
    %c0_77 = arith.constant 0 : index
    %c2 = arith.constant 2 : index
    %c0_78 = arith.constant 0 : index
    %c0_79 = arith.constant 0 : index
    %195 = vector.load %arg11[%c0_77, %c2, %c0_78, %c0_79] : memref<1x8x8x16xf32, #tpu.memory_space<vmem>>, vector<1x1x8x16xf32>
    %196 = vector.shape_cast %195 : vector<1x1x8x16xf32> to vector<8x16xf32>
    %197 = vector.shape_cast %194 : vector<8x16xf32> to vector<1x1x8x16xf32>
    tpu.vector_store %arg11[%c0_77, %c2, %c0_78, %c0_79], %197 {strides = array<i32>} : memref<1x8x8x16xf32, #tpu.memory_space<vmem>>, vector<1x1x8x16xf32>,
    %198 = vector.extract_strided_slice %89 {offsets = [3, 0, 0], sizes = [1, 8, 16], strides = [1, 1, 1]} : vector<8x8x16xf32> to vector<1x8x16xf32>
    %199 = vector.shape_cast %198 : vector<1x8x16xf32> to vector<8x16xf32>
    %200 = vector.extract_strided_slice %173 {offsets = [0, 3, 0], sizes = [8, 1, 16], strides = [1, 1, 1]} : vector<8x8x16xf32> to vector<8x1x16xf32>
    %201 = vector.shape_cast %200 : vector<8x1x16xf32> to vector<8x16xf32>
    %202 = arith.addf %199, %201 : vector<8x16xf32>
    %c0_80 = arith.constant 0 : index
    %c3 = arith.constant 3 : index
    %c0_81 = arith.constant 0 : index
    %c0_82 = arith.constant 0 : index
    %203 = vector.load %arg11[%c0_80, %c3, %c0_81, %c0_82] : memref<1x8x8x16xf32, #tpu.memory_space<vmem>>, vector<1x1x8x16xf32>
    %204 = vector.shape_cast %203 : vector<1x1x8x16xf32> to vector<8x16xf32>
    %205 = vector.shape_cast %202 : vector<8x16xf32> to vector<1x1x8x16xf32>
    tpu.vector_store %arg11[%c0_80, %c3, %c0_81, %c0_82], %205 {strides = array<i32>} : memref<1x8x8x16xf32, #tpu.memory_space<vmem>>, vector<1x1x8x16xf32>,
    %206 = vector.extract_strided_slice %89 {offsets = [4, 0, 0], sizes = [1, 8, 16], strides = [1, 1, 1]} : vector<8x8x16xf32> to vector<1x8x16xf32>
    %207 = vector.shape_cast %206 : vector<1x8x16xf32> to vector<8x16xf32>
    %208 = vector.extract_strided_slice %173 {offsets = [0, 4, 0], sizes = [8, 1, 16], strides = [1, 1, 1]} : vector<8x8x16xf32> to vector<8x1x16xf32>
    %209 = vector.shape_cast %208 : vector<8x1x16xf32> to vector<8x16xf32>
    %210 = arith.addf %207, %209 : vector<8x16xf32>
    %c0_83 = arith.constant 0 : index
    %c4 = arith.constant 4 : index
    %c0_84 = arith.constant 0 : index
    %c0_85 = arith.constant 0 : index
    %211 = vector.load %arg11[%c0_83, %c4, %c0_84, %c0_85] : memref<1x8x8x16xf32, #tpu.memory_space<vmem>>, vector<1x1x8x16xf32>
    %212 = vector.shape_cast %211 : vector<1x1x8x16xf32> to vector<8x16xf32>
    %213 = vector.shape_cast %210 : vector<8x16xf32> to vector<1x1x8x16xf32>
    tpu.vector_store %arg11[%c0_83, %c4, %c0_84, %c0_85], %213 {strides = array<i32>} : memref<1x8x8x16xf32, #tpu.memory_space<vmem>>, vector<1x1x8x16xf32>,
    %214 = vector.extract_strided_slice %89 {offsets = [5, 0, 0], sizes = [1, 8, 16], strides = [1, 1, 1]} : vector<8x8x16xf32> to vector<1x8x16xf32>
    %215 = vector.shape_cast %214 : vector<1x8x16xf32> to vector<8x16xf32>
    %216 = vector.extract_strided_slice %173 {offsets = [0, 5, 0], sizes = [8, 1, 16], strides = [1, 1, 1]} : vector<8x8x16xf32> to vector<8x1x16xf32>
    %217 = vector.shape_cast %216 : vector<8x1x16xf32> to vector<8x16xf32>
    %218 = arith.addf %215, %217 : vector<8x16xf32>
    %c0_86 = arith.constant 0 : index
    %c5 = arith.constant 5 : index
    %c0_87 = arith.constant 0 : index
    %c0_88 = arith.constant 0 : index
    %219 = vector.load %arg11[%c0_86, %c5, %c0_87, %c0_88] : memref<1x8x8x16xf32, #tpu.memory_space<vmem>>, vector<1x1x8x16xf32>
    %220 = vector.shape_cast %219 : vector<1x1x8x16xf32> to vector<8x16xf32>
    %221 = vector.shape_cast %218 : vector<8x16xf32> to vector<1x1x8x16xf32>
    tpu.vector_store %arg11[%c0_86, %c5, %c0_87, %c0_88], %221 {strides = array<i32>} : memref<1x8x8x16xf32, #tpu.memory_space<vmem>>, vector<1x1x8x16xf32>,
    %222 = vector.extract_strided_slice %89 {offsets = [6, 0, 0], sizes = [1, 8, 16], strides = [1, 1, 1]} : vector<8x8x16xf32> to vector<1x8x16xf32>
    %223 = vector.shape_cast %222 : vector<1x8x16xf32> to vector<8x16xf32>
    %224 = vector.extract_strided_slice %173 {offsets = [0, 6, 0], sizes = [8, 1, 16], strides = [1, 1, 1]} : vector<8x8x16xf32> to vector<8x1x16xf32>
    %225 = vector.shape_cast %224 : vector<8x1x16xf32> to vector<8x16xf32>
    %226 = arith.addf %223, %225 : vector<8x16xf32>
    %c0_89 = arith.constant 0 : index
    %c6 = arith.constant 6 : index
    %c0_90 = arith.constant 0 : index
    %c0_91 = arith.constant 0 : index
    %227 = vector.load %arg11[%c0_89, %c6, %c0_90, %c0_91] : memref<1x8x8x16xf32, #tpu.memory_space<vmem>>, vector<1x1x8x16xf32>
    %228 = vector.shape_cast %227 : vector<1x1x8x16xf32> to vector<8x16xf32>
    %229 = vector.shape_cast %226 : vector<8x16xf32> to vector<1x1x8x16xf32>
    tpu.vector_store %arg11[%c0_89, %c6, %c0_90, %c0_91], %229 {strides = array<i32>} : memref<1x8x8x16xf32, #tpu.memory_space<vmem>>, vector<1x1x8x16xf32>,
    %230 = vector.extract_strided_slice %89 {offsets = [7, 0, 0], sizes = [1, 8, 16], strides = [1, 1, 1]} : vector<8x8x16xf32> to vector<1x8x16xf32>
    %231 = vector.shape_cast %230 : vector<1x8x16xf32> to vector<8x16xf32>
    %232 = vector.extract_strided_slice %173 {offsets = [0, 7, 0], sizes = [8, 1, 16], strides = [1, 1, 1]} : vector<8x8x16xf32> to vector<8x1x16xf32>
    %233 = vector.shape_cast %232 : vector<8x1x16xf32> to vector<8x16xf32>
    %234 = arith.addf %231, %233 : vector<8x16xf32>
    %c0_92 = arith.constant 0 : index
    %c7 = arith.constant 7 : index
    %c0_93 = arith.constant 0 : index
    %c0_94 = arith.constant 0 : index
    %235 = vector.load %arg11[%c0_92, %c7, %c0_93, %c0_94] : memref<1x8x8x16xf32, #tpu.memory_space<vmem>>, vector<1x1x8x16xf32>
    %236 = vector.shape_cast %235 : vector<1x1x8x16xf32> to vector<8x16xf32>
    %237 = vector.shape_cast %234 : vector<8x16xf32> to vector<1x1x8x16xf32>
    tpu.vector_store %arg11[%c0_92, %c7, %c0_93, %c0_94], %237 {strides = array<i32>} : memref<1x8x8x16xf32, #tpu.memory_space<vmem>>, vector<1x1x8x16xf32>,
    return
  }
  func.func @transform_0(%arg0: i32, %arg1: i32, %arg2: i32) -> (i32, i32, i32, i32) {
    %c0_i32 = arith.constant 0 : i32
    %c0_i32_0 = arith.constant 0 : i32
    return %arg0, %arg1, %arg2, %c0_i32 : i32, i32, i32, i32
  }
  func.func @transform_1(%arg0: i32, %arg1: i32, %arg2: i32) -> (i32, i32, i32, i32) {
    %c0_i32 = arith.constant 0 : i32
    %c0_i32_0 = arith.constant 0 : i32
    return %arg0, %arg2, %arg1, %c0_i32 : i32, i32, i32, i32
  }
  func.func @transform_2(%arg0: i32, %arg1: i32, %arg2: i32) -> (i32, i32) {
    %c0_i32 = arith.constant 0 : i32
    %c0_i32_0 = arith.constant 0 : i32
    %c0_i32_1 = arith.constant 0 : i32
    return %c0_i32, %c0_i32_0 : i32, i32
  }
  func.func @transform_3(%arg0: i32, %arg1: i32, %arg2: i32) -> (i32, i32) {
    %c0_i32 = arith.constant 0 : i32
    %c0_i32_0 = arith.constant 0 : i32
    %c0_i32_1 = arith.constant 0 : i32
    return %c0_i32, %c0_i32_0 : i32, i32
  }
  func.func @transform_4(%arg0: i32, %arg1: i32, %arg2: i32) -> (i32, i32) {
    %c0_i32 = arith.constant 0 : i32
    %c0_i32_0 = arith.constant 0 : i32
    %c0_i32_1 = arith.constant 0 : i32
    return %c0_i32, %c0_i32_0 : i32, i32
  }
  func.func @transform_5(%arg0: i32, %arg1: i32, %arg2: i32) -> (i32, i32) {
    %c0_i32 = arith.constant 0 : i32
    %c0_i32_0 = arith.constant 0 : i32
    %c0_i32_1 = arith.constant 0 : i32
    return %c0_i32, %c0_i32_0 : i32, i32
  }
  func.func @transform_6(%arg0: i32, %arg1: i32, %arg2: i32) -> (i32, i32) {
    %c0_i32 = arith.constant 0 : i32
    %c0_i32_0 = arith.constant 0 : i32
    %c0_i32_1 = arith.constant 0 : i32
    return %c0_i32, %c0_i32_0 : i32, i32
  }
  func.func @transform_7(%arg0: i32, %arg1: i32, %arg2: i32) -> (i32, i32) {
    %c0_i32 = arith.constant 0 : i32
    %c0_i32_0 = arith.constant 0 : i32
    %c0_i32_1 = arith.constant 0 : i32
    return %c0_i32, %c0_i32_0 : i32, i32
  }
  func.func @transform_8(%arg0: i32, %arg1: i32, %arg2: i32) -> (i32, i32, i32, i32) {
    %c0_i32 = arith.constant 0 : i32
    %c0_i32_0 = arith.constant 0 : i32
    return %arg0, %arg1, %arg2, %c0_i32 : i32, i32, i32, i32
  }
}

</mosaic_0001>

<llo_original>
// kernel: distogram_head.1
$region0: #{distogram_head.1}
  #allocation0 [shape = 'u32[]', space=smem, size = 0x4, offset = 0x4, fixed_abs, tag = 'smem constant byte address 0x4 - core index']
  #allocation1 [shape = 'u32[144,128]{1,0:T(1,128)}', space=vmem, size = 0x12000, scoped, tag = 'internal scratch']
  %s0 = inlined_call_operand.hbm [shape: f32[2,16,16,32], index: 0, kind: input, shape index: {}, may-alias: {0,1}]
  %s1 = inlined_call_operand.hbm [shape: f32[2,16,16,32], index: 1, kind: input, shape index: {}, may-alias: {0,1}]
  %s2 = inlined_call_operand.vmem [shape: f32[1,32], index: 2, kind: input, shape index: {}]
  %s3 = inlined_call_operand.vmem [shape: f32[1,32], index: 3, kind: input, shape index: {}]
  %s4 = inlined_call_operand.vmem [shape: bf16[32,32], index: 4, kind: input, shape index: {}]
  %s5 = inlined_call_operand.vmem [shape: f32[1,32], index: 5, kind: input, shape index: {}]
  %s6 = inlined_call_operand.vmem [shape: bf16[32,16], index: 6, kind: input, shape index: {}]
  %s7 = inlined_call_operand.vmem [shape: f32[1,16], index: 7, kind: input, shape index: {}]
  %s8 = inlined_call_operand.hbm [shape: f32[2,16,16,16], index: 8, kind: output, shape index: {}]
  %s9 = sld [smem:[#allocation0]]
  $region73: #{distogram_head.1} parent=0
    _
  %s11 = ssub.s32 1, %s9
  %s12 = scalar_select 0, %s11, %s9
  $region1: #{distogram_head.1} parent=0
    #allocation2 [shape = 'u8[65536]{0}', space=vmem, size = 0x10000, scoped, tag = 'input window, operand 0']
    #allocation3 [shape = 's32[2]{0}', space=sflag, size = 0x8, scoped, tag = 'scoped memory for distogram_head.1']
    #allocation4 [shape = 's32[2]{0}', space=sflag, size = 0x8, scoped, tag = 'scoped memory for distogram_head.1']
    #allocation5 [shape = 'u8[65536]{0}', space=vmem, size = 0x10000, scoped, tag = 'input window, operand 1']
    #allocation6 [shape = 's32[2]{0}', space=sflag, size = 0x8, scoped, tag = 'scoped memory for distogram_head.1']
    #allocation7 [shape = 'u8[65536]{0}', space=vmem, size = 0x10000, scoped, tag = 'output window, operand 0']
    %13 = vsyncpa [#allocation3], 0
    %s14 = scalar_lea.sflag [#allocation3], 1
    %15 = vsyncpa %s14, 0
    %16 = vsyncpa [#allocation6], 0
    %s17 = scalar_lea.sflag [#allocation6], 1
    %18 = vsyncpa %s17, 0
    %19 = vsyncpa [#allocation4], 0
    %s20 = scalar_lea.sflag [#allocation4], 1
    %21 = vsyncpa %s20, 0
    loop: start=0, step=1, limit=10
    $region2: #{distogram_head.1} parent=1 // loop_pre_header
      _
    $region3: #{distogram_head.1} parent=1 // loop_header
      %s23 = sphi 0, %s27
      %p24 = scmp.ge.s32.totalorder %s23, 10
      %s30 = sphi 0, %s49
      %s31 = sphi 0, %s45
      %s32 = sphi 0, %s41
      %s33 = sphi 0, %s30
      %s34 = sphi 0, %s31
      %s35 = sphi 0, %s32
      %s36 = sphi 0, %s33
      %s37 = sphi 0, %s34
      %s38 = sphi 0, %s35
      %s56 = sphi 0, %s58
      %s59 = sphi 0, %s56
      %s60 = sphi 0, %s59
      %s76 = sphi 0, %s60
      %s86 = sphi 0, %s88
      %s89 = sphi 0, %s86
      %s90 = sphi 0, %s89
      %s106 = sphi 0, %s90
      %s110 = sphi 0, %s110
      %s112 = sphi 0, %s110
      %s113 = sphi 0, %s112
      %s127 = sphi 0, %s113
      %s131 = sphi 0, %s131
      %s133 = sphi 0, %s131
      %s134 = sphi 0, %s133
      %s148 = sphi 0, %s134
      %s152 = sphi 0, %s152
      %s154 = sphi 0, %s152
      %s155 = sphi 0, %s154
      %s169 = sphi 0, %s155
      %s173 = sphi 0, %s173
      %s175 = sphi 0, %s173
      %s176 = sphi 0, %s175
      %s190 = sphi 0, %s176
      %s194 = sphi 0, %s194
      %s196 = sphi 0, %s194
      %s197 = sphi 0, %s196
      %s211 = sphi 0, %s197
      %s215 = sphi 0, %s215
      %s217 = sphi 0, %s215
      %s218 = sphi 0, %s217
      %s232 = sphi 0, %s218
      %s242 = sphi 0, %s244
      %s245 = sphi 0, %s242
      %s246 = sphi 0, %s245
      %s262 = sphi 0, %s246
    $region4: #{distogram_head.1} parent=1 // loop_header_branch
      %26 = sbr.rel (%p24) target = $region8
    $region5: #{distogram_head.1} parent=1 // loop_body
      %s28 = ssub.s32 %s23, 1
      %s29 = ssub.s32 %s23, 2
      %s39 = sadd.s32 1, %s32
      %p40 = scmp.ge.s32.totalorder %s39, 2
      %s41 = scalar_select %p40, 0, %s39
      %s42 = sadd.s32 1, %s31
      %s43 = scalar_select %p40, %s42, %s31
      %p44 = scmp.ge.s32.totalorder %s43, 2
      %s45 = scalar_select %p44, 0, %s43
      %s46 = sadd.s32 1, %s30
      %s47 = scalar_select %p44, %s46, %s30
      %p48 = scmp.ge.s32.totalorder %s47, 2
      %s49 = scalar_select %p48, 0, %s47
      %s50 = ssub.s32 %s30, %s49
      %s51 = ssub.s32 %s31, %s45
      %s52 = sor.u32 %s50, %s51
      %s53 = ssub.s32 %s32, %s41
      %s54 = sor.u32 %s52, %s53
      %p55 = scmp.eq.s32.totalorder %s54, 0
      %s57 = sadd.s32 %s56, 1
      %s58 = scalar_select %p55, %s56, %s57
      %p61 = pneg %p55
      %p62 = scmp.eq.s32.totalorder %s23, 7
      %p63 = por %p61, %p62
      %p64 = scmp.ne.s32.totalorder %s56, %s59
      %p65 = scmp.eq.s32.totalorder %s23, 0
      %p66 = por %p64, %p65
      %p67 = scmp.ne.s32.totalorder %s56, %s59
      %p68 = scmp.eq.s32.totalorder %s28, 7
      %p69 = por %p67, %p68
      %p70 = scmp.ne.s32.totalorder %s59, %s60
      %p71 = scmp.eq.s32.totalorder %s28, 0
      %p72 = por %p70, %p71
      %p73 = scmp.ne.s32.totalorder %s59, %s60
      %p74 = scmp.eq.s32.totalorder %s29, 7
      %p75 = por %p73, %p74
      %p77 = scmp.ne.s32.totalorder %s60, %s76
      %p78 = scmp.eq.s32.totalorder %s29, 0
      %p79 = por %p77, %p78
      %s80 = ssub.s32 %s30, %s49
      %s81 = ssub.s32 %s32, %s41
      %s82 = sor.u32 %s80, %s81
      %s83 = ssub.s32 %s31, %s45
      %s84 = sor.u32 %s82, %s83
      %p85 = scmp.eq.s32.totalorder %s84, 0
      %s87 = sadd.s32 %s86, 1
      %s88 = scalar_select %p85, %s86, %s87
      %p91 = pneg %p85
      %p92 = scmp.eq.s32.totalorder %s23, 7
      %p93 = por %p91, %p92
      %p94 = scmp.ne.s32.totalorder %s86, %s89
      %p95 = scmp.eq.s32.totalorder %s23, 0
      %p96 = por %p94, %p95
      %p97 = scmp.ne.s32.totalorder %s86, %s89
      %p98 = scmp.eq.s32.totalorder %s28, 7
      %p99 = por %p97, %p98
      %p100 = scmp.ne.s32.totalorder %s89, %s90
      %p101 = scmp.eq.s32.totalorder %s28, 0
      %p102 = por %p100, %p101
      %p103 = scmp.ne.s32.totalorder %s89, %s90
      %p104 = scmp.eq.s32.totalorder %s29, 7
      %p105 = por %p103, %p104
      %p107 = scmp.ne.s32.totalorder %s90, %s106
      %p108 = scmp.eq.s32.totalorder %s29, 0
      %p109 = por %p107, %p108
      %s111 = sadd.s32 %s110, 1
      %p114 = scmp.eq.s32.totalorder %s23, 7
      %p115 = scmp.ne.s32.totalorder %s110, %s112
      %p116 = scmp.eq.s32.totalorder %s23, 0
      %p117 = por %p115, %p116
      %p118 = scmp.ne.s32.totalorder %s110, %s112
      %p119 = scmp.eq.s32.totalorder %s28, 7
      %p120 = por %p118, %p119
      %p121 = scmp.ne.s32.totalorder %s112, %s113
      %p122 = scmp.eq.s32.totalorder %s28, 0
      %p123 = por %p121, %p122
      %p124 = scmp.ne.s32.totalorder %s112, %s113
      %p125 = scmp.eq.s32.totalorder %s29, 7
      %p126 = por %p124, %p125
      %p128 = scmp.ne.s32.totalorder %s113, %s127
      %p129 = scmp.eq.s32.totalorder %s29, 0
      %p130 = por %p128, %p129
      %s132 = sadd.s32 %s131, 1
      %p135 = scmp.eq.s32.totalorder %s23, 7
      %p136 = scmp.ne.s32.totalorder %s131, %s133
      %p137 = scmp.eq.s32.totalorder %s23, 0
      %p138 = por %p136, %p137
      %p139 = scmp.ne.s32.totalorder %s131, %s133
      %p140 = scmp.eq.s32.totalorder %s28, 7
      %p141 = por %p139, %p140
      %p142 = scmp.ne.s32.totalorder %s133, %s134
      %p143 = scmp.eq.s32.totalorder %s28, 0
      %p144 = por %p142, %p143
      %p145 = scmp.ne.s32.totalorder %s133, %s134
      %p146 = scmp.eq.s32.totalorder %s29, 7
      %p147 = por %p145, %p146
      %p149 = scmp.ne.s32.totalorder %s134, %s148
      %p150 = scmp.eq.s32.totalorder %s29, 0
      %p151 = por %p149, %p150
      %s153 = sadd.s32 %s152, 1
      %p156 = scmp.eq.s32.totalorder %s23, 7
      %p157 = scmp.ne.s32.totalorder %s152, %s154
      %p158 = scmp.eq.s32.totalorder %s23, 0
      %p159 = por %p157, %p158
      %p160 = scmp.ne.s32.totalorder %s152, %s154
      %p161 = scmp.eq.s32.totalorder %s28, 7
      %p162 = por %p160, %p161
      %p163 = scmp.ne.s32.totalorder %s154, %s155
      %p164 = scmp.eq.s32.totalorder %s28, 0
      %p165 = por %p163, %p164
      %p166 = scmp.ne.s32.totalorder %s154, %s155
      %p167 = scmp.eq.s32.totalorder %s29, 7
      %p168 = por %p166, %p167
      %p170 = scmp.ne.s32.totalorder %s155, %s169
      %p171 = scmp.eq.s32.totalorder %s29, 0
      %p172 = por %p170, %p171
      %s174 = sadd.s32 %s173, 1
      %p177 = scmp.eq.s32.totalorder %s23, 7
      %p178 = scmp.ne.s32.totalorder %s173, %s175
      %p179 = scmp.eq.s32.totalorder %s23, 0
      %p180 = por %p178, %p179
      %p181 = scmp.ne.s32.totalorder %s173, %s175
      %p182 = scmp.eq.s32.totalorder %s28, 7
      %p183 = por %p181, %p182
      %p184 = scmp.ne.s32.totalorder %s175, %s176
      %p185 = scmp.eq.s32.totalorder %s28, 0
      %p186 = por %p184, %p185
      %p187 = scmp.ne.s32.totalorder %s175, %s176
      %p188 = scmp.eq.s32.totalorder %s29, 7
      %p189 = por %p187, %p188
      %p191 = scmp.ne.s32.totalorder %s176, %s190
      %p192 = scmp.eq.s32.totalorder %s29, 0
      %p193 = por %p191, %p192
      %s195 = sadd.s32 %s194, 1
      %p198 = scmp.eq.s32.totalorder %s23, 7
      %p199 = scmp.ne.s32.totalorder %s194, %s196
      %p200 = scmp.eq.s32.totalorder %s23, 0
      %p201 = por %p199, %p200
      %p202 = scmp.ne.s32.totalorder %s194, %s196
      %p203 = scmp.eq.s32.totalorder %s28, 7
      %p204 = por %p202, %p203
      %p205 = scmp.ne.s32.totalorder %s196, %s197
      %p206 = scmp.eq.s32.totalorder %s28, 0
      %p207 = por %p205, %p206
      %p208 = scmp.ne.s32.totalorder %s196, %s197
      %p209 = scmp.eq.s32.totalorder %s29, 7
      %p210 = por %p208, %p209
      %p212 = scmp.ne.s32.totalorder %s197, %s211
      %p213 = scmp.eq.s32.totalorder %s29, 0
      %p214 = por %p212, %p213
      %s216 = sadd.s32 %s215, 1
      %p219 = scmp.eq.s32.totalorder %s23, 7
      %p220 = scmp.ne.s32.totalorder %s215, %s217
      %p221 = scmp.eq.s32.totalorder %s23, 0
      %p222 = por %p220, %p221
      %p223 = scmp.ne.s32.totalorder %s215, %s217
      %p224 = scmp.eq.s32.totalorder %s28, 7
      %p225 = por %p223, %p224
      %p226 = scmp.ne.s32.totalorder %s217, %s218
      %p227 = scmp.eq.s32.totalorder %s28, 0
      %p228 = por %p226, %p227
      %p229 = scmp.ne.s32.totalorder %s217, %s218
      %p230 = scmp.eq.s32.totalorder %s29, 7
      %p231 = por %p229, %p230
      %p233 = scmp.ne.s32.totalorder %s218, %s232
      %p234 = scmp.eq.s32.totalorder %s29, 0
      %p235 = por %p233, %p234
      %s236 = ssub.s32 %s30, %s49
      %s237 = ssub.s32 %s31, %s45
      %s238 = sor.u32 %s236, %s237
      %s239 = ssub.s32 %s32, %s41
      %s240 = sor.u32 %s238, %s239
      %p241 = scmp.eq.s32.totalorder %s240, 0
      %s243 = sadd.s32 %s242, 1
      %s244 = scalar_select %p241, %s242, %s243
      %p247 = pneg %p241
      %p248 = scmp.eq.s32.totalorder %s23, 7
      %p249 = por %p247, %p248
      %p250 = scmp.ne.s32.totalorder %s242, %s245
      %p251 = scmp.eq.s32.totalorder %s23, 0
      %p252 = por %p250, %p251
      %p253 = scmp.ne.s32.totalorder %s242, %s245
      %p254 = scmp.eq.s32.totalorder %s28, 7
      %p255 = por %p253, %p254
      %p256 = scmp.ne.s32.totalorder %s245, %s246
      %p257 = scmp.eq.s32.totalorder %s28, 0
      %p258 = por %p256, %p257
      %p259 = scmp.ne.s32.totalorder %s245, %s246
      %p260 = scmp.eq.s32.totalorder %s29, 7
      %p261 = por %p259, %p260
      %p263 = scmp.ne.s32.totalorder %s246, %s262
      %p264 = scmp.eq.s32.totalorder %s29, 0
      %p265 = por %p263, %p264
      %p266 = scmp.le.s32.totalorder 1, %s23
      %p267 = scmp.lt.s32.totalorder %s23, 9
      %p268 = pnand %p266, %p267
      %p269 = pneg %p268
      // Predicated region
      $region9: #{distogram_head.1} parent=5 // pred_check
        _
      $region10: #{distogram_head.1} parent=5 // pred_check_branch
        %271 = sbr.rel (%p268) target = $region12
      $region11: #{distogram_head.1} parent=5 // pred_region
        %s272 = ssub.s32 %s23, 1
        // Predicated region
        $region13: #{distogram_head.1} parent=11 // pred_check
          %p273 = pneg %p123
        $region14: #{distogram_head.1} parent=11 // pred_check_branch
          %275 = sbr.rel (%p273) target = $region16
        $region15: #{distogram_head.1} parent=11 // pred_region
          _
        $region16: #{distogram_head.1} parent=11 // pred_fallthru
          _
        // Predicated region
        $region17: #{distogram_head.1} parent=11 // pred_check
          %p276 = pneg %p144
        $region18: #{distogram_head.1} parent=11 // pred_check_branch
          %278 = sbr.rel (%p276) target = $region20
        $region19: #{distogram_head.1} parent=11 // pred_region
          _
        $region20: #{distogram_head.1} parent=11 // pred_fallthru
          _
        // Predicated region
        $region21: #{distogram_head.1} parent=11 // pred_check
          %p279 = pneg %p165
        $region22: #{distogram_head.1} parent=11 // pred_check_branch
          %281 = sbr.rel (%p279) target = $region24
        $region23: #{distogram_head.1} parent=11 // pred_region
          _
        $region24: #{distogram_head.1} parent=11 // pred_fallthru
          _
        // Predicated region
        $region25: #{distogram_head.1} parent=11 // pred_check
          %p282 = pneg %p186
        $region26: #{distogram_head.1} parent=11 // pred_check_branch
          %284 = sbr.rel (%p282) target = $region28
        $region27: #{distogram_head.1} parent=11 // pred_region
          _
        $region28: #{distogram_head.1} parent=11 // pred_fallthru
          _
        // Predicated region
        $region29: #{distogram_head.1} parent=11 // pred_check
          %p285 = pneg %p207
        $region30: #{distogram_head.1} parent=11 // pred_check_branch
          %287 = sbr.rel (%p285) target = $region32
        $region31: #{distogram_head.1} parent=11 // pred_region
          _
        $region32: #{distogram_head.1} parent=11 // pred_fallthru
          _
        // Predicated region
        $region33: #{distogram_head.1} parent=11 // pred_check
          %p288 = pneg %p228
        $region34: #{distogram_head.1} parent=11 // pred_check_branch
          %290 = sbr.rel (%p288) target = $region36
        $region35: #{distogram_head.1} parent=11 // pred_region
          _
        $region36: #{distogram_head.1} parent=11 // pred_fallthru
          _
      $region12: #{distogram_head.1} parent=5 // pred_fallthru
        _
      %p291 = scmp.lt.s32.totalorder %s23, 8
      // Predicated region
      $region37: #{distogram_head.1} parent=5 // pred_check
        %p292 = pneg %p291
      $region38: #{distogram_head.1} parent=5 // pred_check_branch
        %294 = sbr.rel (%p292) target = $region40
      $region39: #{distogram_head.1} parent=5 // pred_region
        // Predicated region
        $region41: #{distogram_head.1} parent=39 // pred_check
          %p295 = pneg %p66
        $region42: #{distogram_head.1} parent=39 // pred_check_branch
          %297 = sbr.rel (%p295) target = $region44
        $region43: #{distogram_head.1} parent=39 // pred_region
          %s298 = sand.u32 %s56, 1
          %s299 = scalar_lea.sflag [#allocation3], %s298
          %s300 = sand.u32 %s56, 1
          %s301 = smul.addr %s300, 64
          %s302 = scalar_lea.vmem [#allocation2], %s301
          %s303 = smul.u32 8, %s31
          %s305 = ssub.s32 1024, 1024
          %306 = vsyncadd %s299, %s305
          %s307 = smul.addr %s303, 2
          %s308 = sadd.s32 %s32, %s307
          %s309 = smul.addr %s30, 32
          %s310 = sadd.s32 %s308, %s309
          %s311 = smul.addr %s310, 128
          %s312 = scalar_lea.hbm %s0, %s311
          %s313 = sshll.u32 %s302, 4
          %s314 = int_to_ptr.vmem [resolvable:$true] %s313
          %319 = dma.hbm_to_vmem [thread:$0]  %s312, 1024, %s314, %s299, 256, 128, 8
        $region44: #{distogram_head.1} parent=39 // pred_fallthru
          _
        // Predicated region
        $region45: #{distogram_head.1} parent=39 // pred_check
          %p320 = pneg %p96
        $region46: #{distogram_head.1} parent=39 // pred_check_branch
          %322 = sbr.rel (%p320) target = $region48
        $region47: #{distogram_head.1} parent=39 // pred_region
          %s323 = sand.u32 %s86, 1
          %s324 = scalar_lea.sflag [#allocation6], %s323
          %s325 = sand.u32 %s86, 1
          %s326 = smul.addr %s325, 64
          %s327 = scalar_lea.vmem [#allocation5], %s326
          %s328 = smul.u32 8, %s32
          %s330 = ssub.s32 1024, 1024
          %331 = vsyncadd %s324, %s330
          %s332 = smul.addr %s328, 2
          %s333 = sadd.s32 %s31, %s332
          %s334 = smul.addr %s30, 32
          %s335 = sadd.s32 %s333, %s334
          %s336 = smul.addr %s335, 128
          %s337 = scalar_lea.hbm %s1, %s336
          %s338 = sshll.u32 %s327, 4
          %s339 = int_to_ptr.vmem [resolvable:$true] %s338
          %344 = dma.hbm_to_vmem [thread:$0]  %s337, 1024, %s339, %s324, 256, 128, 8
        $region48: #{distogram_head.1} parent=39 // pred_fallthru
          _
      $region40: #{distogram_head.1} parent=5 // pred_fallthru
        _
      %p345 = scmp.le.s32.totalorder 1, %s23
      %p346 = scmp.lt.s32.totalorder %s23, 9
      %p347 = pnand %p345, %p346
      %p348 = pneg %p347
      // Predicated region
      $region49: #{distogram_head.1} parent=5 // pred_check
        _
      $region50: #{distogram_head.1} parent=5 // pred_check_branch
        %350 = sbr.rel (%p347) target = $region52
      $region51: #{distogram_head.1} parent=5 // pred_region
        %s351 = ssub.s32 %s23, 1
        %s352 = sand.u32 %s59, 1
        %s353 = scalar_lea.sflag [#allocation3], %s352
        %s354 = sand.u32 %s59, 1
        %s355 = smul.addr %s354, 64
        %s356 = scalar_lea.vmem [#allocation2], %s355
        // Predicated region
        $region53: #{distogram_head.1} parent=51 // pred_check
          %p357 = pneg %p72
        $region54: #{distogram_head.1} parent=51 // pred_check_branch
          %359 = sbr.rel (%p357) target = $region56
        $region55: #{distogram_head.1} parent=51 // pred_region
          %360 = dma.done %s353, 1024
        $region56: #{distogram_head.1} parent=51 // pred_fallthru
          _
        %s361 = sand.u32 %s89, 1
        %s362 = scalar_lea.sflag [#allocation6], %s361
        %s363 = sand.u32 %s89, 1
        %s364 = smul.addr %s363, 64
        %s365 = scalar_lea.vmem [#allocation5], %s364
        // Predicated region
        $region57: #{distogram_head.1} parent=51 // pred_check
          %p366 = pneg %p102
        $region58: #{distogram_head.1} parent=51 // pred_check_branch
          %368 = sbr.rel (%p366) target = $region60
        $region59: #{distogram_head.1} parent=51 // pred_region
          %369 = dma.done %s362, 1024
        $region60: #{distogram_head.1} parent=51 // pred_fallthru
          _
        %s370 = sand.u32 %s59, 1
        %s371 = scalar_lea.sflag [#allocation3], %s370
        %s372 = sand.u32 %s59, 1
        %s373 = smul.addr %s372, 64
        %s374 = scalar_lea.vmem [#allocation2], %s373
        %p375 = pneg %p72
        %p376 = pneg %p69
        %s377 = sand.u32 %s89, 1
        %s378 = scalar_lea.sflag [#allocation6], %s377
        %s379 = sand.u32 %s89, 1
        %s380 = smul.addr %s379, 64
        %s381 = scalar_lea.vmem [#allocation5], %s380
        %p382 = pneg %p102
        %p383 = pneg %p99
        %p384 = pneg %p123
        %p385 = pneg %p120
        %p386 = pneg %p144
        %p387 = pneg %p141
        %p388 = pneg %p165
        %p389 = pneg %p162
        %p390 = pneg %p186
        %p391 = pneg %p183
        %p392 = pneg %p207
        %p393 = pneg %p204
        %p394 = pneg %p228
        %p395 = pneg %p225
        %p396 = pneg %p258
        %p397 = pneg %p255
        %s398 = sand.u32 %s245, 1
        %s399 = scalar_lea.sflag [#allocation4], %s398
        %s400 = sand.u32 %s245, 1
        %s401 = smul.addr %s400, 64
        %s402 = scalar_lea.vmem [#allocation7], %s401
        %s403 = smul.u32 8, %s34
        %s404 = smul.u32 8, %s35
        %s405 = smul.u32 8, %s34
        %v407 = vld [vmem:[%s2] sm:$0x1]
        %v408 = vld [vmem:[%s3] sm:$0x1]
        %v409 = vld [vmem:[%s4] sm:$0xf]
        %v410 = vld [vmem:[%s4 + $0x4] sm:$0xf]
        %v411 = vld [vmem:[%s4 + $0x8] sm:$0xf]
        %v412 = vld [vmem:[%s4 + $0xc] sm:$0xf]
        %v413 = vld [vmem:[%s6] sm:$0xf]
        %v414 = vld [vmem:[%s6 + $0x4] sm:$0xf]
        %v415 = vld [vmem:[%s6 + $0x8] sm:$0xf]
        %v416 = vld [vmem:[%s6 + $0xc] sm:$0xf]
        %v417 = vld [vmem:[%s5] sm:$0x1]
        %v418 = vld [vmem:[%s7] sm:$0x1]
        %v419 = vld [vmem:[%s356] sm:$0xff]
        %v420 = vld [vmem:[%s356 + $0x8] sm:$0xff]
        %v421 = vld [vmem:[%s356 + $0x10] sm:$0xff]
        %v422 = vld [vmem:[%s356 + $0x18] sm:$0xff]
        %v423 = vld [vmem:[%s356 + $0x20] sm:$0xff]
        %v424 = vld [vmem:[%s356 + $0x28] sm:$0xff]
        %v425 = vld [vmem:[%s356 + $0x30] sm:$0xff]
        %v426 = vld [vmem:[%s356 + $0x38] sm:$0xff]
        %vm427 = vcmask 261120
        %v428 = vsel %vm427, %v419, 0.0
        %429 = vadd.xlane.f32.xlu0 %v428
        %v430 = vpop.xlane.xlu0 %429
        %v431 = vsel %vm427, %v420, 0.0
        %432 = vadd.xlane.f32.xlu0 %v431
        %v433 = vpop.xlane.xlu0 %432
        %v434 = vsel %vm427, %v421, 0.0
        %435 = vadd.xlane.f32.xlu0 %v434
        %v436 = vpop.xlane.xlu0 %435
        %v437 = vsel %vm427, %v422, 0.0
        %438 = vadd.xlane.f32.xlu0 %v437
        %v439 = vpop.xlane.xlu0 %438
        %v440 = vsel %vm427, %v423, 0.0
        %441 = vadd.xlane.f32.xlu0 %v440
        %v442 = vpop.xlane.xlu0 %441
        %v443 = vsel %vm427, %v424, 0.0
        %444 = vadd.xlane.f32.xlu0 %v443
        %v445 = vpop.xlane.xlu0 %444
        %v446 = vsel %vm427, %v425, 0.0
        %447 = vadd.xlane.f32.xlu0 %v446
        %v448 = vpop.xlane.xlu0 %447
        %v449 = vsel %vm427, %v426, 0.0
        %450 = vadd.xlane.f32.xlu0 %v449
        %v451 = vpop.xlane.xlu0 %450
        %v452 = vrcp.pop 32.0
        %v453 = vmul.f32 %v430, %v452
        %v454 = vmul.f32 %v433, %v452
        %v455 = vmul.f32 %v436, %v452
        %v456 = vmul.f32 %v439, %v452
        %v457 = vmul.f32 %v442, %v452
        %v458 = vmul.f32 %v445, %v452
        %v459 = vmul.f32 %v448, %v452
        %v460 = vmul.f32 %v451, %v452
        %v461 = vsub.f32 %v419, %v453
        %v462 = vsub.f32 %v420, %v454
        %v463 = vsub.f32 %v421, %v455
        %v464 = vsub.f32 %v422, %v456
        %v465 = vsub.f32 %v423, %v457
        %v466 = vsub.f32 %v424, %v458
        %v467 = vsub.f32 %v425, %v459
        %v468 = vsub.f32 %v426, %v460
        %v469 = vmul.f32 %v461, %v461
        %v470 = vmul.f32 %v462, %v462
        %v471 = vmul.f32 %v463, %v463
        %v472 = vmul.f32 %v464, %v464
        %v473 = vmul.f32 %v465, %v465
        %v474 = vmul.f32 %v466, %v466
        %v475 = vmul.f32 %v467, %v467
        %v476 = vmul.f32 %v468, %v468
        %v477 = vsel %vm427, %v469, 0.0
        %478 = vadd.xlane.f32.xlu0 %v477
        %v479 = vpop.xlane.xlu0 %478
        %v480 = vsel %vm427, %v470, 0.0
        %481 = vadd.xlane.f32.xlu0 %v480
        %v482 = vpop.xlane.xlu0 %481
        %v483 = vsel %vm427, %v471, 0.0
        %484 = vadd.xlane.f32.xlu0 %v483
        %v485 = vpop.xlane.xlu0 %484
        %v486 = vsel %vm427, %v472, 0.0
        %487 = vadd.xlane.f32.xlu0 %v486
        %v488 = vpop.xlane.xlu0 %487
        %v489 = vsel %vm427, %v473, 0.0
        %490 = vadd.xlane.f32.xlu0 %v489
        %v491 = vpop.xlane.xlu0 %490
        %v492 = vsel %vm427, %v474, 0.0
        %493 = vadd.xlane.f32.xlu0 %v492
        %v494 = vpop.xlane.xlu0 %493
        %v495 = vsel %vm427, %v475, 0.0
        %496 = vadd.xlane.f32.xlu0 %v495
        %v497 = vpop.xlane.xlu0 %496
        %v498 = vsel %vm427, %v476, 0.0
        %499 = vadd.xlane.f32.xlu0 %v498
        %v500 = vpop.xlane.xlu0 %499
        %v501 = vmul.f32 %v479, %v452
        %v502 = vmul.f32 %v482, %v452
        %v503 = vmul.f32 %v485, %v452
        %v504 = vmul.f32 %v488, %v452
        %v505 = vmul.f32 %v491, %v452
        %v506 = vmul.f32 %v494, %v452
        %v507 = vmul.f32 %v497, %v452
        %v508 = vmul.f32 %v500, %v452
        %v509 = vadd.f32 %v501, 1e-05
        %v510 = vadd.f32 %v502, 1e-05
        %v511 = vadd.f32 %v503, 1e-05
        %v512 = vadd.f32 %v504, 1e-05
        %v513 = vadd.f32 %v505, 1e-05
        %v514 = vadd.f32 %v506, 1e-05
        %v515 = vadd.f32 %v507, 1e-05
        %v516 = vadd.f32 %v508, 1e-05
        %v517 = vrsqrt.pop %v509
        %v518 = vrsqrt.pop %v510
        %v519 = vrsqrt.pop %v511
        %v520 = vrsqrt.pop %v512
        %v521 = vrsqrt.pop %v513
        %v522 = vrsqrt.pop %v514
        %v523 = vrsqrt.pop %v515
        %v524 = vrsqrt.pop %v516
        %v525 = vmul.f32 %v461, %v517
        %v526 = vmul.f32 %v462, %v518
        %v527 = vmul.f32 %v463, %v519
        %v528 = vmul.f32 %v464, %v520
        %v529 = vmul.f32 %v465, %v521
        %v530 = vmul.f32 %v466, %v522
        %v531 = vmul.f32 %v467, %v523
        %v532 = vmul.f32 %v468, %v524
        %v534 = vlaneseq
        %v535 = vshrl.u32 %v534, 7
        %v536 = vsub.s32 0, %v535
        %v537 = vrot.slane %v407, %v536
        %v539 = vmul.f32 %v525, %v537
        %v540 = vmul.f32 %v526, %v537
        %v541 = vmul.f32 %v527, %v537
        %v542 = vmul.f32 %v528, %v537
        %v543 = vmul.f32 %v529, %v537
        %v544 = vmul.f32 %v530, %v537
        %v545 = vmul.f32 %v531, %v537
        %v546 = vmul.f32 %v532, %v537
        %v548 = vlaneseq
        %v549 = vshrl.u32 %v548, 7
        %v550 = vsub.s32 0, %v549
        %v551 = vrot.slane %v408, %v550
        %v553 = vadd.f32 %v539, %v551
        %v554 = vadd.f32 %v540, %v551
        %v555 = vadd.f32 %v541, %v551
        %v556 = vadd.f32 %v542, %v551
        %v557 = vadd.f32 %v543, %v551
        %v558 = vadd.f32 %v544, %v551
        %v559 = vadd.f32 %v545, %v551
        %v560 = vadd.f32 %v546, %v551
        %v561 = vpack.c.bf16 %v554, %v553
        %v562 = vpack.c.bf16 %v556, %v555
        %v563 = vpack.c.bf16 %v558, %v557
        %v564 = vpack.c.bf16 %v560, %v559
        %v566 = vlaneseq
        %v567 = vshrl.u32 %v566, 7
        %v568 = vsub.s32 0, %v567
        %v569 = vrot.slane %v417, %v568
        %v575 = vunpack.c.l.b16 %v409
        %v576 = vunpack.c.l.b16 %v410
        %v577 = vunpack.c.l.b16 %v411
        %v578 = vunpack.c.l.b16 %v412
        %v579 = vpack.c.b16 %v576, %v575
        %v580 = vpack.c.b16 %v578, %v577
        %v584 = vsel %vm427, %v561, 0
        %v587 = vsel %vm427, %v562, 0
        %v590 = vsel %vm427, %v563, 0
        %v593 = vsel %vm427, %v564, 0
        %595 = vmatprep.subr.bf16.mxu0 0
        %596 = vmatpush1.bf16.msra.mxu0 0
        %597 = vmatprep.subr.bf16.mxu0 0
        %598 = vmatpush1.bf16.msra.mxu0 0
        %599 = vmatprep.subr.bf16.mxu0 0
        %600 = vmatpush1.bf16.msra.mxu0 0
        %601 = vmatprep.subr.bf16.mxu0 0
        %602 = vmatpush1.bf16.msra.mxu0 0
        %603 = vmatprep.subr.bf16.mxu0 0
        %604 = vmatpush1.bf16.msra.mxu0 0
        %605 = vmatprep.subr.bf16.mxu0 0
        %606 = vmatpush1.bf16.msra.mxu0 0
        %607 = vmatprep.subr.bf16.mxu0 0
        %608 = vmatpush1.bf16.msra.mxu0 %v580
        %609 = vmatprep.subr.bf16.mxu0 0
        %610 = vmatpush1.bf16.msra.mxu0 %v579
        %611 = vmatprep.subr.bf16.mxu0 0
        %612 = vmatpush2.bf16.msra.mxu0 0
        %613 = vmatprep.subr.bf16.mxu0 0
        %614 = vmatpush2.bf16.msra.mxu0 0
        %615 = vmatprep.subr.bf16.mxu0 0
        %616 = vmatpush2.bf16.msra.mxu0 0
        %617 = vmatprep.subr.bf16.mxu0 0
        %618 = vmatpush2.bf16.msra.mxu0 0
        %619 = vmatprep.subr.bf16.mxu0 0
        %620 = vmatpush2.bf16.msra.mxu0 0
        %621 = vmatprep.subr.bf16.mxu0 0
        %622 = vmatpush2.bf16.msra.mxu0 0
        %623 = vmatprep.subr.bf16.mxu0 0
        %624 = vmatpush2.bf16.msra.mxu0 0
        %625 = vmatprep.subr.bf16.mxu0 0
        %626 = vmatpush2.bf16.msra.mxu0 0
        %627 = vmatprep.mubr.bf16.mxu0 0
        %628 = vmatmul.mubr.bf16.gmra.mxu0 %v584
        %v629 = vpop.f32.mrf.mxu0
        %v630 = vadd.f32 %v569, %v629
        %v631 = vpop.f32.mrf.mxu0
        %v632 = vpop.f32.mrf.mxu0
        %v633 = vadd.f32 %v569, %v632
        %v634 = vpop.f32.mrf.mxu0
        %635 = vmatprep.mubr.bf16.mxu0 0
        %636 = vmatmul.mubr.bf16.gmra.mxu0 %v587
        %v637 = vpop.f32.mrf.mxu0
        %v638 = vadd.f32 %v569, %v637
        %v639 = vpop.f32.mrf.mxu0
        %v640 = vpop.f32.mrf.mxu0
        %v641 = vadd.f32 %v569, %v640
        %v642 = vpop.f32.mrf.mxu0
        %643 = vmatprep.mubr.bf16.mxu0 0
        %644 = vmatmul.mubr.bf16.gmra.mxu0 %v590
        %v645 = vpop.f32.mrf.mxu0
        %v646 = vadd.f32 %v569, %v645
        %v647 = vpop.f32.mrf.mxu0
        %v648 = vpop.f32.mrf.mxu0
        %v649 = vadd.f32 %v569, %v648
        %v650 = vpop.f32.mrf.mxu0
        %651 = vmatprep.mubr.bf16.mxu0 0
        %652 = vmatmul.mubr.bf16.gmra.mxu0 %v593
        %v653 = vpop.f32.mrf.mxu0
        %v654 = vadd.f32 %v569, %v653
        %v655 = vpop.f32.mrf.mxu0
        %v656 = vpop.f32.mrf.mxu0
        %v657 = vadd.f32 %v569, %v656
        %v658 = vpop.f32.mrf.mxu0
        %659 = vdwg.mxu0
        %v660 = vmul.f32 %v630, 0.5
        %v661 = vmul.f32 %v633, 0.5
        %v662 = vmul.f32 %v638, 0.5
        %v663 = vmul.f32 %v641, 0.5
        %v664 = vmul.f32 %v646, 0.5
        %v665 = vmul.f32 %v649, 0.5
        %v666 = vmul.f32 %v654, 0.5
        %v667 = vmul.f32 %v657, 0.5
        %v668 = vmul.f32 %v630, 0.70710677
        %v669 = vmul.f32 %v633, 0.70710677
        %v670 = vmul.f32 %v638, 0.70710677
        %v671 = vmul.f32 %v641, 0.70710677
        %v672 = vmul.f32 %v646, 0.70710677
        %v673 = vmul.f32 %v649, 0.70710677
        %v674 = vmul.f32 %v654, 0.70710677
        %v675 = vmul.f32 %v657, 0.70710677
        %v676 = vmax.f32 %v668, -4.0
        %v677 = vmax.f32 %v669, -4.0
        %v678 = vmax.f32 %v670, -4.0
        %v679 = vmax.f32 %v671, -4.0
        %v680 = vmax.f32 %v672, -4.0
        %v681 = vmax.f32 %v673, -4.0
        %v682 = vmax.f32 %v674, -4.0
        %v683 = vmax.f32 %v675, -4.0
        %v684 = vmin.f32 %v676, 4.0
        %v685 = vmin.f32 %v677, 4.0
        %v686 = vmin.f32 %v678, 4.0
        %v687 = vmin.f32 %v679, 4.0
        %v688 = vmin.f32 %v680, 4.0
        %v689 = vmin.f32 %v681, 4.0
        %v690 = vmin.f32 %v682, 4.0
        %v691 = vmin.f32 %v683, 4.0
        %v692 = vmul.f32 %v684, %v684
        %v693 = vmul.f32 %v685, %v685
        %v694 = vmul.f32 %v686, %v686
        %v695 = vmul.f32 %v687, %v687
        %v696 = vmul.f32 %v688, %v688
        %v697 = vmul.f32 %v689, %v689
        %v698 = vmul.f32 %v690, %v690
        %v699 = vmul.f32 %v691, %v691
        %v700 = vmul.f32 %v692, -2.7261424e-10
        %v701 = vmul.f32 %v693, -2.7261424e-10
        %v702 = vmul.f32 %v694, -2.7261424e-10
        %v703 = vmul.f32 %v695, -2.7261424e-10
        %v704 = vmul.f32 %v696, -2.7261424e-10
        %v705 = vmul.f32 %v697, -2.7261424e-10
        %v706 = vmul.f32 %v698, -2.7261424e-10
        %v707 = vmul.f32 %v699, -2.7261424e-10
        %v708 = vadd.f32 %v700, 2.7706815e-08
        %v709 = vadd.f32 %v701, 2.7706815e-08
        %v710 = vadd.f32 %v702, 2.7706815e-08
        %v711 = vadd.f32 %v703, 2.7706815e-08
        %v712 = vadd.f32 %v704, 2.7706815e-08
        %v713 = vadd.f32 %v705, 2.7706815e-08
        %v714 = vadd.f32 %v706, 2.7706815e-08
        %v715 = vadd.f32 %v707, 2.7706815e-08
        %v716 = vmul.f32 %v708, %v692
        %v717 = vmul.f32 %v709, %v693
        %v718 = vmul.f32 %v710, %v694
        %v719 = vmul.f32 %v711, %v695
        %v720 = vmul.f32 %v712, %v696
        %v721 = vmul.f32 %v713, %v697
        %v722 = vmul.f32 %v714, %v698
        %v723 = vmul.f32 %v715, %v699
        %v724 = vadd.f32 %v716, -2.101024e-06
        %v725 = vadd.f32 %v717, -2.101024e-06
        %v726 = vadd.f32 %v718, -2.101024e-06
        %v727 = vadd.f32 %v719, -2.101024e-06
        %v728 = vadd.f32 %v720, -2.101024e-06
        %v729 = vadd.f32 %v721, -2.101024e-06
        %v730 = vadd.f32 %v722, -2.101024e-06
        %v731 = vadd.f32 %v723, -2.101024e-06
        %v732 = vmul.f32 %v724, %v692
        %v733 = vmul.f32 %v725, %v693
        %v734 = vmul.f32 %v726, %v694
        %v735 = vmul.f32 %v727, %v695
        %v736 = vmul.f32 %v728, %v696
        %v737 = vmul.f32 %v729, %v697
        %v738 = vmul.f32 %v730, %v698
        %v739 = vmul.f32 %v731, %v699
        %v740 = vadd.f32 %v732, -5.6925062e-05
        %v741 = vadd.f32 %v733, -5.6925062e-05
        %v742 = vadd.f32 %v734, -5.6925062e-05
        %v743 = vadd.f32 %v735, -5.6925062e-05
        %v744 = vadd.f32 %v736, -5.6925062e-05
        %v745 = vadd.f32 %v737, -5.6925062e-05
        %v746 = vadd.f32 %v738, -5.6925062e-05
        %v747 = vadd.f32 %v739, -5.6925062e-05
        %v748 = vmul.f32 %v740, %v692
        %v749 = vmul.f32 %v741, %v693
        %v750 = vmul.f32 %v742, %v694
        %v751 = vmul.f32 %v743, %v695
        %v752 = vmul.f32 %v744, %v696
        %v753 = vmul.f32 %v745, %v697
        %v754 = vmul.f32 %v746, %v698
        %v755 = vmul.f32 %v747, %v699
        %v756 = vadd.f32 %v748, -0.00073499064
        %v757 = vadd.f32 %v749, -0.00073499064
        %v758 = vadd.f32 %v750, -0.00073499064
        %v759 = vadd.f32 %v751, -0.00073499064
        %v760 = vadd.f32 %v752, -0.00073499064
        %v761 = vadd.f32 %v753, -0.00073499064
        %v762 = vadd.f32 %v754, -0.00073499064
        %v763 = vadd.f32 %v755, -0.00073499064
        %v764 = vmul.f32 %v756, %v692
        %v765 = vmul.f32 %v757, %v693
        %v766 = vmul.f32 %v758, %v694
        %v767 = vmul.f32 %v759, %v695
        %v768 = vmul.f32 %v760, %v696
        %v769 = vmul.f32 %v761, %v697
        %v770 = vmul.f32 %v762, %v698
        %v771 = vmul.f32 %v763, %v699
        %v772 = vadd.f32 %v764, -0.0029546
        %v773 = vadd.f32 %v765, -0.0029546
        %v774 = vadd.f32 %v766, -0.0029546
        %v775 = vadd.f32 %v767, -0.0029546
        %v776 = vadd.f32 %v768, -0.0029546
        %v777 = vadd.f32 %v769, -0.0029546
        %v778 = vadd.f32 %v770, -0.0029546
        %v779 = vadd.f32 %v771, -0.0029546
        %v780 = vmul.f32 %v772, %v692
        %v781 = vmul.f32 %v773, %v693
        %v782 = vmul.f32 %v774, %v694
        %v783 = vmul.f32 %v775, %v695
        %v784 = vmul.f32 %v776, %v696
        %v785 = vmul.f32 %v777, %v697
        %v786 = vmul.f32 %v778, %v698
        %v787 = vmul.f32 %v779, %v699
        %v788 = vadd.f32 %v780, -0.016096033
        %v789 = vadd.f32 %v781, -0.016096033
        %v790 = vadd.f32 %v782, -0.016096033
        %v791 = vadd.f32 %v783, -0.016096033
        %v792 = vadd.f32 %v784, -0.016096033
        %v793 = vadd.f32 %v785, -0.016096033
        %v794 = vadd.f32 %v786, -0.016096033
        %v795 = vadd.f32 %v787, -0.016096033
        %v796 = vmul.f32 %v788, %v684
        %v797 = vmul.f32 %v789, %v685
        %v798 = vmul.f32 %v790, %v686
        %v799 = vmul.f32 %v791, %v687
        %v800 = vmul.f32 %v792, %v688
        %v801 = vmul.f32 %v793, %v689
        %v802 = vmul.f32 %v794, %v690
        %v803 = vmul.f32 %v795, %v691
        %v804 = vmul.f32 %v692, -9.1846655e-09
        %v805 = vmul.f32 %v693, -9.1846655e-09
        %v806 = vmul.f32 %v694, -9.1846655e-09
        %v807 = vmul.f32 %v695, -9.1846655e-09
        %v808 = vmul.f32 %v696, -9.1846655e-09
        %v809 = vmul.f32 %v697, -9.1846655e-09
        %v810 = vmul.f32 %v698, -9.1846655e-09
        %v811 = vmul.f32 %v699, -9.1846655e-09
        %v812 = vadd.f32 %v804, -4.867052e-07
        %v813 = vadd.f32 %v805, -4.867052e-07
        %v814 = vadd.f32 %v806, -4.867052e-07
        %v815 = vadd.f32 %v807, -4.867052e-07
        %v816 = vadd.f32 %v808, -4.867052e-07
        %v817 = vadd.f32 %v809, -4.867052e-07
        %v818 = vadd.f32 %v810, -4.867052e-07
        %v819 = vadd.f32 %v811, -4.867052e-07
        %v820 = vmul.f32 %v812, %v692
        %v821 = vmul.f32 %v813, %v693
        %v822 = vmul.f32 %v814, %v694
        %v823 = vmul.f32 %v815, %v695
        %v824 = vmul.f32 %v816, %v696
        %v825 = vmul.f32 %v817, %v697
        %v826 = vmul.f32 %v818, %v698
        %v827 = vmul.f32 %v819, %v699
        %v828 = vadd.f32 %v820, -1.45660715e-05
        %v829 = vadd.f32 %v821, -1.45660715e-05
        %v830 = vadd.f32 %v822, -1.45660715e-05
        %v831 = vadd.f32 %v823, -1.45660715e-05
        %v832 = vadd.f32 %v824, -1.45660715e-05
        %v833 = vadd.f32 %v825, -1.45660715e-05
        %v834 = vadd.f32 %v826, -1.45660715e-05
        %v835 = vadd.f32 %v827, -1.45660715e-05
        %v836 = vmul.f32 %v828, %v692
        %v837 = vmul.f32 %v829, %v693
        %v838 = vmul.f32 %v830, %v694
        %v839 = vmul.f32 %v831, %v695
        %v840 = vmul.f32 %v832, %v696
        %v841 = vmul.f32 %v833, %v697
        %v842 = vmul.f32 %v834, %v698
        %v843 = vmul.f32 %v835, %v699
        %v844 = vadd.f32 %v836, -0.00021337405
        %v845 = vadd.f32 %v837, -0.00021337405
        %v846 = vadd.f32 %v838, -0.00021337405
        %v847 = vadd.f32 %v839, -0.00021337405
        %v848 = vadd.f32 %v840, -0.00021337405
        %v849 = vadd.f32 %v841, -0.00021337405
        %v850 = vadd.f32 %v842, -0.00021337405
        %v851 = vadd.f32 %v843, -0.00021337405
        %v852 = vmul.f32 %v844, %v692
        %v853 = vmul.f32 %v845, %v693
        %v854 = vmul.f32 %v846, %v694
        %v855 = vmul.f32 %v847, %v695
        %v856 = vmul.f32 %v848, %v696
        %v857 = vmul.f32 %v849, %v697
        %v858 = vmul.f32 %v850, %v698
        %v859 = vmul.f32 %v851, %v699
        %v860 = vadd.f32 %v852, -0.001682827
        %v861 = vadd.f32 %v853, -0.001682827
        %v862 = vadd.f32 %v854, -0.001682827
        %v863 = vadd.f32 %v855, -0.001682827
        %v864 = vadd.f32 %v856, -0.001682827
        %v865 = vadd.f32 %v857, -0.001682827
        %v866 = vadd.f32 %v858, -0.001682827
        %v867 = vadd.f32 %v859, -0.001682827
        %v868 = vmul.f32 %v860, %v692
        %v869 = vmul.f32 %v861, %v693
        %v870 = vmul.f32 %v862, %v694
        %v871 = vmul.f32 %v863, %v695
        %v872 = vmul.f32 %v864, %v696
        %v873 = vmul.f32 %v865, %v697
        %v874 = vmul.f32 %v866, %v698
        %v875 = vmul.f32 %v867, %v699
        %v876 = vadd.f32 %v868, -0.0073733293
        %v877 = vadd.f32 %v869, -0.0073733293
        %v878 = vadd.f32 %v870, -0.0073733293
        %v879 = vadd.f32 %v871, -0.0073733293
        %v880 = vadd.f32 %v872, -0.0073733293
        %v881 = vadd.f32 %v873, -0.0073733293
        %v882 = vadd.f32 %v874, -0.0073733293
        %v883 = vadd.f32 %v875, -0.0073733293
        %v884 = vmul.f32 %v876, %v692
        %v885 = vmul.f32 %v877, %v693
        %v886 = vmul.f32 %v878, %v694
        %v887 = vmul.f32 %v879, %v695
        %v888 = vmul.f32 %v880, %v696
        %v889 = vmul.f32 %v881, %v697
        %v890 = vmul.f32 %v882, %v698
        %v891 = vmul.f32 %v883, %v699
        %v892 = vadd.f32 %v884, -0.014264739
        %v893 = vadd.f32 %v885, -0.014264739
        %v894 = vadd.f32 %v886, -0.014264739
        %v895 = vadd.f32 %v887, -0.014264739
        %v896 = vadd.f32 %v888, -0.014264739
        %v897 = vadd.f32 %v889, -0.014264739
        %v898 = vadd.f32 %v890, -0.014264739
        %v899 = vadd.f32 %v891, -0.014264739
        %v900 = vrcp.pop %v892
        %v901 = vmul.f32 %v796, %v900
        %v902 = vrcp.pop %v893
        %v903 = vmul.f32 %v797, %v902
        %v904 = vrcp.pop %v894
        %v905 = vmul.f32 %v798, %v904
        %v906 = vrcp.pop %v895
        %v907 = vmul.f32 %v799, %v906
        %v908 = vrcp.pop %v896
        %v909 = vmul.f32 %v800, %v908
        %v910 = vrcp.pop %v897
        %v911 = vmul.f32 %v801, %v910
        %v912 = vrcp.pop %v898
        %v913 = vmul.f32 %v802, %v912
        %v914 = vrcp.pop %v899
        %v915 = vmul.f32 %v803, %v914
        %v916 = vadd.f32 %v901, 1.0
        %v917 = vadd.f32 %v903, 1.0
        %v918 = vadd.f32 %v905, 1.0
        %v919 = vadd.f32 %v907, 1.0
        %v920 = vadd.f32 %v909, 1.0
        %v921 = vadd.f32 %v911, 1.0
        %v922 = vadd.f32 %v913, 1.0
        %v923 = vadd.f32 %v915, 1.0
        %v924 = vmul.f32 %v660, %v916
        %v925 = vmul.f32 %v661, %v917
        %v926 = vmul.f32 %v662, %v918
        %v927 = vmul.f32 %v663, %v919
        %v928 = vmul.f32 %v664, %v920
        %v929 = vmul.f32 %v665, %v921
        %v930 = vmul.f32 %v666, %v922
        %v931 = vmul.f32 %v667, %v923
        %v932 = vpack.c.bf16 %v925, %v924
        %v933 = vpack.c.bf16 %v927, %v926
        %v934 = vpack.c.bf16 %v929, %v928
        %v935 = vpack.c.bf16 %v931, %v930
        %v937 = vlaneseq
        %v938 = vshrl.u32 %v937, 7
        %v939 = vsub.s32 0, %v938
        %v940 = vrot.slane %v418, %v939
        %v946 = vunpack.c.l.b16 %v413
        %v947 = vunpack.c.l.b16 %v414
        %v948 = vunpack.c.l.b16 %v415
        %v949 = vunpack.c.l.b16 %v416
        %v950 = vpack.c.b16 %v947, %v946
        %v951 = vpack.c.b16 %v949, %v948
        %v955 = vsel %vm427, %v932, 0
        %v958 = vsel %vm427, %v933, 0
        %v961 = vsel %vm427, %v934, 0
        %v964 = vsel %vm427, %v935, 0
        %966 = vmatprep.subr.bf16.mxu0 0
        %967 = vmatpush1.bf16.msra.mxu0 0
        %968 = vmatprep.subr.bf16.mxu0 0
        %969 = vmatpush1.bf16.msra.mxu0 0
        %970 = vmatprep.subr.bf16.mxu0 0
        %971 = vmatpush1.bf16.msra.mxu0 0
        %972 = vmatprep.subr.bf16.mxu0 0
        %973 = vmatpush1.bf16.msra.mxu0 0
        %974 = vmatprep.subr.bf16.mxu0 0
        %975 = vmatpush1.bf16.msra.mxu0 0
        %976 = vmatprep.subr.bf16.mxu0 0
        %977 = vmatpush1.bf16.msra.mxu0 0
        %978 = vmatprep.subr.bf16.mxu0 0
        %979 = vmatpush1.bf16.msra.mxu0 %v951
        %980 = vmatprep.subr.bf16.mxu0 0
        %981 = vmatpush1.bf16.msra.mxu0 %v950
        %982 = vmatprep.subr.bf16.mxu0 0
        %983 = vmatpush2.bf16.msra.mxu0 0
        %984 = vmatprep.subr.bf16.mxu0 0
        %985 = vmatpush2.bf16.msra.mxu0 0
        %986 = vmatprep.subr.bf16.mxu0 0
        %987 = vmatpush2.bf16.msra.mxu0 0
        %988 = vmatprep.subr.bf16.mxu0 0
        %989 = vmatpush2.bf16.msra.mxu0 0
        %990 = vmatprep.subr.bf16.mxu0 0
        %991 = vmatpush2.bf16.msra.mxu0 0
        %992 = vmatprep.subr.bf16.mxu0 0
        %993 = vmatpush2.bf16.msra.mxu0 0
        %994 = vmatprep.subr.bf16.mxu0 0
        %995 = vmatpush2.bf16.msra.mxu0 0
        %996 = vmatprep.subr.bf16.mxu0 0
        %997 = vmatpush2.bf16.msra.mxu0 0
        %998 = vmatprep.mubr.bf16.mxu0 0
        %999 = vmatmul.mubr.bf16.gmra.mxu0 %v955
        %v1000 = vpop.f32.mrf.mxu0
        %v1001 = vadd.f32 %v940, %v1000
        %v1002 = vpop.f32.mrf.mxu0
        %v1003 = vpop.f32.mrf.mxu0
        %v1004 = vadd.f32 %v940, %v1003
        %v1005 = vpop.f32.mrf.mxu0
        %1006 = vmatprep.mubr.bf16.mxu0 0
        %1007 = vmatmul.mubr.bf16.gmra.mxu0 %v958
        %v1008 = vpop.f32.mrf.mxu0
        %v1009 = vadd.f32 %v940, %v1008
        %v1010 = vpop.f32.mrf.mxu0
        %v1011 = vpop.f32.mrf.mxu0
        %v1012 = vadd.f32 %v940, %v1011
        %v1013 = vpop.f32.mrf.mxu0
        %1014 = vmatprep.mubr.bf16.mxu0 0
        %1015 = vmatmul.mubr.bf16.gmra.mxu0 %v961
        %v1016 = vpop.f32.mrf.mxu0
        %v1017 = vadd.f32 %v940, %v1016
        %v1018 = vpop.f32.mrf.mxu0
        %v1019 = vpop.f32.mrf.mxu0
        %v1020 = vadd.f32 %v940, %v1019
        %v1021 = vpop.f32.mrf.mxu0
        %1022 = vmatprep.mubr.bf16.mxu0 0
        %1023 = vmatmul.mubr.bf16.gmra.mxu0 %v964
        %v1024 = vpop.f32.mrf.mxu0
        %v1025 = vadd.f32 %v940, %v1024
        %v1026 = vpop.f32.mrf.mxu0
        %v1027 = vpop.f32.mrf.mxu0
        %v1028 = vadd.f32 %v940, %v1027
        %v1029 = vpop.f32.mrf.mxu0
        %1030 = vdwg.mxu0
        %v1031 = vld [vmem:[%s365] sm:$0xff]
        %v1032 = vld [vmem:[%s365 + $0x8] sm:$0xff]
        %v1033 = vld [vmem:[%s365 + $0x10] sm:$0xff]
        %v1034 = vld [vmem:[%s365 + $0x18] sm:$0xff]
        %v1035 = vld [vmem:[%s365 + $0x20] sm:$0xff]
        %v1036 = vld [vmem:[%s365 + $0x28] sm:$0xff]
        %v1037 = vld [vmem:[%s365 + $0x30] sm:$0xff]
        %v1038 = vld [vmem:[%s365 + $0x38] sm:$0xff]
        %v1039 = vsel %vm427, %v1031, 0.0
        %1040 = vadd.xlane.f32.xlu0 %v1039
        %v1041 = vpop.xlane.xlu0 %1040
        %v1042 = vsel %vm427, %v1032, 0.0
        %1043 = vadd.xlane.f32.xlu0 %v1042
        %v1044 = vpop.xlane.xlu0 %1043
        %v1045 = vsel %vm427, %v1033, 0.0
        %1046 = vadd.xlane.f32.xlu0 %v1045
        %v1047 = vpop.xlane.xlu0 %1046
        %v1048 = vsel %vm427, %v1034, 0.0
        %1049 = vadd.xlane.f32.xlu0 %v1048
        %v1050 = vpop.xlane.xlu0 %1049
        %v1051 = vsel %vm427, %v1035, 0.0
        %1052 = vadd.xlane.f32.xlu0 %v1051
        %v1053 = vpop.xlane.xlu0 %1052
        %v1054 = vsel %vm427, %v1036, 0.0
        %1055 = vadd.xlane.f32.xlu0 %v1054
        %v1056 = vpop.xlane.xlu0 %1055
        %v1057 = vsel %vm427, %v1037, 0.0
        %1058 = vadd.xlane.f32.xlu0 %v1057
        %v1059 = vpop.xlane.xlu0 %1058
        %v1060 = vsel %vm427, %v1038, 0.0
        %1061 = vadd.xlane.f32.xlu0 %v1060
        %v1062 = vpop.xlane.xlu0 %1061
        %v1063 = vmul.f32 %v1041, %v452
        %v1064 = vmul.f32 %v1044, %v452
        %v1065 = vmul.f32 %v1047, %v452
        %v1066 = vmul.f32 %v1050, %v452
        %v1067 = vmul.f32 %v1053, %v452
        %v1068 = vmul.f32 %v1056, %v452
        %v1069 = vmul.f32 %v1059, %v452
        %v1070 = vmul.f32 %v1062, %v452
        %v1071 = vsub.f32 %v1031, %v1063
        %v1072 = vsub.f32 %v1032, %v1064
        %v1073 = vsub.f32 %v1033, %v1065
        %v1074 = vsub.f32 %v1034, %v1066
        %v1075 = vsub.f32 %v1035, %v1067
        %v1076 = vsub.f32 %v1036, %v1068
        %v1077 = vsub.f32 %v1037, %v1069
        %v1078 = vsub.f32 %v1038, %v1070
        %v1079 = vmul.f32 %v1071, %v1071
        %v1080 = vmul.f32 %v1072, %v1072
        %v1081 = vmul.f32 %v1073, %v1073
        %v1082 = vmul.f32 %v1074, %v1074
        %v1083 = vmul.f32 %v1075, %v1075
        %v1084 = vmul.f32 %v1076, %v1076
        %v1085 = vmul.f32 %v1077, %v1077
        %v1086 = vmul.f32 %v1078, %v1078
        %v1087 = vsel %vm427, %v1079, 0.0
        %1088 = vadd.xlane.f32.xlu0 %v1087
        %v1089 = vpop.xlane.xlu0 %1088
        %v1090 = vsel %vm427, %v1080, 0.0
        %1091 = vadd.xlane.f32.xlu0 %v1090
        %v1092 = vpop.xlane.xlu0 %1091
        %v1093 = vsel %vm427, %v1081, 0.0
        %1094 = vadd.xlane.f32.xlu0 %v1093
        %v1095 = vpop.xlane.xlu0 %1094
        %v1096 = vsel %vm427, %v1082, 0.0
        %1097 = vadd.xlane.f32.xlu0 %v1096
        %v1098 = vpop.xlane.xlu0 %1097
        %v1099 = vsel %vm427, %v1083, 0.0
        %1100 = vadd.xlane.f32.xlu0 %v1099
        %v1101 = vpop.xlane.xlu0 %1100
        %v1102 = vsel %vm427, %v1084, 0.0
        %1103 = vadd.xlane.f32.xlu0 %v1102
        %v1104 = vpop.xlane.xlu0 %1103
        %v1105 = vsel %vm427, %v1085, 0.0
        %1106 = vadd.xlane.f32.xlu0 %v1105
        %v1107 = vpop.xlane.xlu0 %1106
        %v1108 = vsel %vm427, %v1086, 0.0
        %1109 = vadd.xlane.f32.xlu0 %v1108
        %v1110 = vpop.xlane.xlu0 %1109
        %v1111 = vmul.f32 %v1089, %v452
        %v1112 = vmul.f32 %v1092, %v452
        %v1113 = vmul.f32 %v1095, %v452
        %v1114 = vmul.f32 %v1098, %v452
        %v1115 = vmul.f32 %v1101, %v452
        %v1116 = vmul.f32 %v1104, %v452
        %v1117 = vmul.f32 %v1107, %v452
        %v1118 = vmul.f32 %v1110, %v452
        %v1119 = vadd.f32 %v1111, 1e-05
        %v1120 = vadd.f32 %v1112, 1e-05
        %v1121 = vadd.f32 %v1113, 1e-05
        %v1122 = vadd.f32 %v1114, 1e-05
        %v1123 = vadd.f32 %v1115, 1e-05
        %v1124 = vadd.f32 %v1116, 1e-05
        %v1125 = vadd.f32 %v1117, 1e-05
        %v1126 = vadd.f32 %v1118, 1e-05
        %v1127 = vrsqrt.pop %v1119
        %v1128 = vrsqrt.pop %v1120
        %v1129 = vrsqrt.pop %v1121
        %v1130 = vrsqrt.pop %v1122
        %v1131 = vrsqrt.pop %v1123
        %v1132 = vrsqrt.pop %v1124
        %v1133 = vrsqrt.pop %v1125
        %v1134 = vrsqrt.pop %v1126
        %v1135 = vmul.f32 %v1071, %v1127
        %v1136 = vmul.f32 %v1072, %v1128
        %v1137 = vmul.f32 %v1073, %v1129
        %v1138 = vmul.f32 %v1074, %v1130
        %v1139 = vmul.f32 %v1075, %v1131
        %v1140 = vmul.f32 %v1076, %v1132
        %v1141 = vmul.f32 %v1077, %v1133
        %v1142 = vmul.f32 %v1078, %v1134
        %v1143 = vmul.f32 %v1135, %v537
        %v1144 = vmul.f32 %v1136, %v537
        %v1145 = vmul.f32 %v1137, %v537
        %v1146 = vmul.f32 %v1138, %v537
        %v1147 = vmul.f32 %v1139, %v537
        %v1148 = vmul.f32 %v1140, %v537
        %v1149 = vmul.f32 %v1141, %v537
        %v1150 = vmul.f32 %v1142, %v537
        %v1151 = vadd.f32 %v1143, %v551
        %v1152 = vadd.f32 %v1144, %v551
        %v1153 = vadd.f32 %v1145, %v551
        %v1154 = vadd.f32 %v1146, %v551
        %v1155 = vadd.f32 %v1147, %v551
        %v1156 = vadd.f32 %v1148, %v551
        %v1157 = vadd.f32 %v1149, %v551
        %v1158 = vadd.f32 %v1150, %v551
        %v1159 = vpack.c.bf16 %v1152, %v1151
        %v1160 = vpack.c.bf16 %v1154, %v1153
        %v1161 = vpack.c.bf16 %v1156, %v1155
        %v1162 = vpack.c.bf16 %v1158, %v1157
        %v1164 = vsel %vm427, %v1159, 0
        %v1167 = vsel %vm427, %v1160, 0
        %v1170 = vsel %vm427, %v1161, 0
        %v1173 = vsel %vm427, %v1162, 0
        %1175 = vmatprep.subr.bf16.mxu0 0
        %1176 = vmatpush1.bf16.msra.mxu0 0
        %1177 = vmatprep.subr.bf16.mxu0 0
        %1178 = vmatpush1.bf16.msra.mxu0 0
        %1179 = vmatprep.subr.bf16.mxu0 0
        %1180 = vmatpush1.bf16.msra.mxu0 0
        %1181 = vmatprep.subr.bf16.mxu0 0
        %1182 = vmatpush1.bf16.msra.mxu0 0
        %1183 = vmatprep.subr.bf16.mxu0 0
        %1184 = vmatpush1.bf16.msra.mxu0 0
        %1185 = vmatprep.subr.bf16.mxu0 0
        %1186 = vmatpush1.bf16.msra.mxu0 0
        %1187 = vmatprep.subr.bf16.mxu0 0
        %1188 = vmatpush1.bf16.msra.mxu0 %v580
        %1189 = vmatprep.subr.bf16.mxu0 0
        %1190 = vmatpush1.bf16.msra.mxu0 %v579
        %1191 = vmatprep.subr.bf16.mxu0 0
        %1192 = vmatpush2.bf16.msra.mxu0 0
        %1193 = vmatprep.subr.bf16.mxu0 0
        %1194 = vmatpush2.bf16.msra.mxu0 0
        %1195 = vmatprep.subr.bf16.mxu0 0
        %1196 = vmatpush2.bf16.msra.mxu0 0
        %1197 = vmatprep.subr.bf16.mxu0 0
        %1198 = vmatpush2.bf16.msra.mxu0 0
        %1199 = vmatprep.subr.bf16.mxu0 0
        %1200 = vmatpush2.bf16.msra.mxu0 0
        %1201 = vmatprep.subr.bf16.mxu0 0
        %1202 = vmatpush2.bf16.msra.mxu0 0
        %1203 = vmatprep.subr.bf16.mxu0 0
        %1204 = vmatpush2.bf16.msra.mxu0 0
        %1205 = vmatprep.subr.bf16.mxu0 0
        %1206 = vmatpush2.bf16.msra.mxu0 0
        %1207 = vmatprep.mubr.bf16.mxu0 0
        %1208 = vmatmul.mubr.bf16.gmra.mxu0 %v1164
        %v1209 = vpop.f32.mrf.mxu0
        %v1210 = vadd.f32 %v569, %v1209
        %v1211 = vpop.f32.mrf.mxu0
        %v1212 = vpop.f32.mrf.mxu0
        %v1213 = vadd.f32 %v569, %v1212
        %v1214 = vpop.f32.mrf.mxu0
        %1215 = vmatprep.mubr.bf16.mxu0 0
        %1216 = vmatmul.mubr.bf16.gmra.mxu0 %v1167
        %v1217 = vpop.f32.mrf.mxu0
        %v1218 = vadd.f32 %v569, %v1217
        %v1219 = vpop.f32.mrf.mxu0
        %v1220 = vpop.f32.mrf.mxu0
        %v1221 = vadd.f32 %v569, %v1220
        %v1222 = vpop.f32.mrf.mxu0
        %1223 = vmatprep.mubr.bf16.mxu0 0
        %1224 = vmatmul.mubr.bf16.gmra.mxu0 %v1170
        %v1225 = vpop.f32.mrf.mxu0
        %v1226 = vadd.f32 %v569, %v1225
        %v1227 = vpop.f32.mrf.mxu0
        %v1228 = vpop.f32.mrf.mxu0
        %v1229 = vadd.f32 %v569, %v1228
        %v1230 = vpop.f32.mrf.mxu0
        %1231 = vmatprep.mubr.bf16.mxu0 0
        %1232 = vmatmul.mubr.bf16.gmra.mxu0 %v1173
        %v1233 = vpop.f32.mrf.mxu0
        %v1234 = vadd.f32 %v569, %v1233
        %v1235 = vpop.f32.mrf.mxu0
        %v1236 = vpop.f32.mrf.mxu0
        %v1237 = vadd.f32 %v569, %v1236
        %v1238 = vpop.f32.mrf.mxu0
        %1239 = vdwg.mxu0
        %v1240 = vmul.f32 %v1210, 0.5
        %v1241 = vmul.f32 %v1213, 0.5
        %v1242 = vmul.f32 %v1218, 0.5
        %v1243 = vmul.f32 %v1221, 0.5
        %v1244 = vmul.f32 %v1226, 0.5
        %v1245 = vmul.f32 %v1229, 0.5
        %v1246 = vmul.f32 %v1234, 0.5
        %v1247 = vmul.f32 %v1237, 0.5
        %v1248 = vmul.f32 %v1210, 0.70710677
        %v1249 = vmul.f32 %v1213, 0.70710677
        %v1250 = vmul.f32 %v1218, 0.70710677
        %v1251 = vmul.f32 %v1221, 0.70710677
        %v1252 = vmul.f32 %v1226, 0.70710677
        %v1253 = vmul.f32 %v1229, 0.70710677
        %v1254 = vmul.f32 %v1234, 0.70710677
        %v1255 = vmul.f32 %v1237, 0.70710677
        %v1256 = vmax.f32 %v1248, -4.0
        %v1257 = vmax.f32 %v1249, -4.0
        %v1258 = vmax.f32 %v1250, -4.0
        %v1259 = vmax.f32 %v1251, -4.0
        %v1260 = vmax.f32 %v1252, -4.0
        %v1261 = vmax.f32 %v1253, -4.0
        %v1262 = vmax.f32 %v1254, -4.0
        %v1263 = vmax.f32 %v1255, -4.0
        %v1264 = vmin.f32 %v1256, 4.0
        %v1265 = vmin.f32 %v1257, 4.0
        %v1266 = vmin.f32 %v1258, 4.0
        %v1267 = vmin.f32 %v1259, 4.0
        %v1268 = vmin.f32 %v1260, 4.0
        %v1269 = vmin.f32 %v1261, 4.0
        %v1270 = vmin.f32 %v1262, 4.0
        %v1271 = vmin.f32 %v1263, 4.0
        %v1272 = vmul.f32 %v1264, %v1264
        %v1273 = vmul.f32 %v1265, %v1265
        %v1274 = vmul.f32 %v1266, %v1266
        %v1275 = vmul.f32 %v1267, %v1267
        %v1276 = vmul.f32 %v1268, %v1268
        %v1277 = vmul.f32 %v1269, %v1269
        %v1278 = vmul.f32 %v1270, %v1270
        %v1279 = vmul.f32 %v1271, %v1271
        %v1280 = vmul.f32 %v1272, -2.7261424e-10
        %v1281 = vmul.f32 %v1273, -2.7261424e-10
        %v1282 = vmul.f32 %v1274, -2.7261424e-10
        %v1283 = vmul.f32 %v1275, -2.7261424e-10
        %v1284 = vmul.f32 %v1276, -2.7261424e-10
        %v1285 = vmul.f32 %v1277, -2.7261424e-10
        %v1286 = vmul.f32 %v1278, -2.7261424e-10
        %v1287 = vmul.f32 %v1279, -2.7261424e-10
        %v1288 = vadd.f32 %v1280, 2.7706815e-08
        %v1289 = vadd.f32 %v1281, 2.7706815e-08
        %v1290 = vadd.f32 %v1282, 2.7706815e-08
        %v1291 = vadd.f32 %v1283, 2.7706815e-08
        %v1292 = vadd.f32 %v1284, 2.7706815e-08
        %v1293 = vadd.f32 %v1285, 2.7706815e-08
        %v1294 = vadd.f32 %v1286, 2.7706815e-08
        %v1295 = vadd.f32 %v1287, 2.7706815e-08
        %v1296 = vmul.f32 %v1288, %v1272
        %v1297 = vmul.f32 %v1289, %v1273
        %v1298 = vmul.f32 %v1290, %v1274
        %v1299 = vmul.f32 %v1291, %v1275
        %v1300 = vmul.f32 %v1292, %v1276
        %v1301 = vmul.f32 %v1293, %v1277
        %v1302 = vmul.f32 %v1294, %v1278
        %v1303 = vmul.f32 %v1295, %v1279
        %v1304 = vadd.f32 %v1296, -2.101024e-06
        %v1305 = vadd.f32 %v1297, -2.101024e-06
        %v1306 = vadd.f32 %v1298, -2.101024e-06
        %v1307 = vadd.f32 %v1299, -2.101024e-06
        %v1308 = vadd.f32 %v1300, -2.101024e-06
        %v1309 = vadd.f32 %v1301, -2.101024e-06
        %v1310 = vadd.f32 %v1302, -2.101024e-06
        %v1311 = vadd.f32 %v1303, -2.101024e-06
        %v1312 = vmul.f32 %v1304, %v1272
        %v1313 = vmul.f32 %v1305, %v1273
        %v1314 = vmul.f32 %v1306, %v1274
        %v1315 = vmul.f32 %v1307, %v1275
        %v1316 = vmul.f32 %v1308, %v1276
        %v1317 = vmul.f32 %v1309, %v1277
        %v1318 = vmul.f32 %v1310, %v1278
        %v1319 = vmul.f32 %v1311, %v1279
        %v1320 = vadd.f32 %v1312, -5.6925062e-05
        %v1321 = vadd.f32 %v1313, -5.6925062e-05
        %v1322 = vadd.f32 %v1314, -5.6925062e-05
        %v1323 = vadd.f32 %v1315, -5.6925062e-05
        %v1324 = vadd.f32 %v1316, -5.6925062e-05
        %v1325 = vadd.f32 %v1317, -5.6925062e-05
        %v1326 = vadd.f32 %v1318, -5.6925062e-05
        %v1327 = vadd.f32 %v1319, -5.6925062e-05
        %v1328 = vmul.f32 %v1320, %v1272
        %v1329 = vmul.f32 %v1321, %v1273
        %v1330 = vmul.f32 %v1322, %v1274
        %v1331 = vmul.f32 %v1323, %v1275
        %v1332 = vmul.f32 %v1324, %v1276
        %v1333 = vmul.f32 %v1325, %v1277
        %v1334 = vmul.f32 %v1326, %v1278
        %v1335 = vmul.f32 %v1327, %v1279
        %v1336 = vadd.f32 %v1328, -0.00073499064
        %v1337 = vadd.f32 %v1329, -0.00073499064
        %v1338 = vadd.f32 %v1330, -0.00073499064
        %v1339 = vadd.f32 %v1331, -0.00073499064
        %v1340 = vadd.f32 %v1332, -0.00073499064
        %v1341 = vadd.f32 %v1333, -0.00073499064
        %v1342 = vadd.f32 %v1334, -0.00073499064
        %v1343 = vadd.f32 %v1335, -0.00073499064
        %v1344 = vmul.f32 %v1336, %v1272
        %v1345 = vmul.f32 %v1337, %v1273
        %v1346 = vmul.f32 %v1338, %v1274
        %v1347 = vmul.f32 %v1339, %v1275
        %v1348 = vmul.f32 %v1340, %v1276
        %v1349 = vmul.f32 %v1341, %v1277
        %v1350 = vmul.f32 %v1342, %v1278
        %v1351 = vmul.f32 %v1343, %v1279
        %v1352 = vadd.f32 %v1344, -0.0029546
        %v1353 = vadd.f32 %v1345, -0.0029546
        %v1354 = vadd.f32 %v1346, -0.0029546
        %v1355 = vadd.f32 %v1347, -0.0029546
        %v1356 = vadd.f32 %v1348, -0.0029546
        %v1357 = vadd.f32 %v1349, -0.0029546
        %v1358 = vadd.f32 %v1350, -0.0029546
        %v1359 = vadd.f32 %v1351, -0.0029546
        %v1360 = vmul.f32 %v1352, %v1272
        %v1361 = vmul.f32 %v1353, %v1273
        %v1362 = vmul.f32 %v1354, %v1274
        %v1363 = vmul.f32 %v1355, %v1275
        %v1364 = vmul.f32 %v1356, %v1276
        %v1365 = vmul.f32 %v1357, %v1277
        %v1366 = vmul.f32 %v1358, %v1278
        %v1367 = vmul.f32 %v1359, %v1279
        %v1368 = vadd.f32 %v1360, -0.016096033
        %v1369 = vadd.f32 %v1361, -0.016096033
        %v1370 = vadd.f32 %v1362, -0.016096033
        %v1371 = vadd.f32 %v1363, -0.016096033
        %v1372 = vadd.f32 %v1364, -0.016096033
        %v1373 = vadd.f32 %v1365, -0.016096033
        %v1374 = vadd.f32 %v1366, -0.016096033
        %v1375 = vadd.f32 %v1367, -0.016096033
        %v1376 = vmul.f32 %v1368, %v1264
        %v1377 = vmul.f32 %v1369, %v1265
        %v1378 = vmul.f32 %v1370, %v1266
        %v1379 = vmul.f32 %v1371, %v1267
        %v1380 = vmul.f32 %v1372, %v1268
        %v1381 = vmul.f32 %v1373, %v1269
        %v1382 = vmul.f32 %v1374, %v1270
        %v1383 = vmul.f32 %v1375, %v1271
        %v1384 = vmul.f32 %v1272, -9.1846655e-09
        %v1385 = vmul.f32 %v1273, -9.1846655e-09
        %v1386 = vmul.f32 %v1274, -9.1846655e-09
        %v1387 = vmul.f32 %v1275, -9.1846655e-09
        %v1388 = vmul.f32 %v1276, -9.1846655e-09
        %v1389 = vmul.f32 %v1277, -9.1846655e-09
        %v1390 = vmul.f32 %v1278, -9.1846655e-09
        %v1391 = vmul.f32 %v1279, -9.1846655e-09
        %v1392 = vadd.f32 %v1384, -4.867052e-07
        %v1393 = vadd.f32 %v1385, -4.867052e-07
        %v1394 = vadd.f32 %v1386, -4.867052e-07
        %v1395 = vadd.f32 %v1387, -4.867052e-07
        %v1396 = vadd.f32 %v1388, -4.867052e-07
        %v1397 = vadd.f32 %v1389, -4.867052e-07
        %v1398 = vadd.f32 %v1390, -4.867052e-07
        %v1399 = vadd.f32 %v1391, -4.867052e-07
        %v1400 = vmul.f32 %v1392, %v1272
        %v1401 = vmul.f32 %v1393, %v1273
        %v1402 = vmul.f32 %v1394, %v1274
        %v1403 = vmul.f32 %v1395, %v1275
        %v1404 = vmul.f32 %v1396, %v1276
        %v1405 = vmul.f32 %v1397, %v1277
        %v1406 = vmul.f32 %v1398, %v1278
        %v1407 = vmul.f32 %v1399, %v1279
        %v1408 = vadd.f32 %v1400, -1.45660715e-05
        %v1409 = vadd.f32 %v1401, -1.45660715e-05
        %v1410 = vadd.f32 %v1402, -1.45660715e-05
        %v1411 = vadd.f32 %v1403, -1.45660715e-05
        %v1412 = vadd.f32 %v1404, -1.45660715e-05
        %v1413 = vadd.f32 %v1405, -1.45660715e-05
        %v1414 = vadd.f32 %v1406, -1.45660715e-05
        %v1415 = vadd.f32 %v1407, -1.45660715e-05
        %v1416 = vmul.f32 %v1408, %v1272
        %v1417 = vmul.f32 %v1409, %v1273
        %v1418 = vmul.f32 %v1410, %v1274
        %v1419 = vmul.f32 %v1411, %v1275
        %v1420 = vmul.f32 %v1412, %v1276
        %v1421 = vmul.f32 %v1413, %v1277
        %v1422 = vmul.f32 %v1414, %v1278
        %v1423 = vmul.f32 %v1415, %v1279
        %v1424 = vadd.f32 %v1416, -0.00021337405
        %v1425 = vadd.f32 %v1417, -0.00021337405
        %v1426 = vadd.f32 %v1418, -0.00021337405
        %v1427 = vadd.f32 %v1419, -0.00021337405
        %v1428 = vadd.f32 %v1420, -0.00021337405
        %v1429 = vadd.f32 %v1421, -0.00021337405
        %v1430 = vadd.f32 %v1422, -0.00021337405
        %v1431 = vadd.f32 %v1423, -0.00021337405
        %v1432 = vmul.f32 %v1424, %v1272
        %v1433 = vmul.f32 %v1425, %v1273
        %v1434 = vmul.f32 %v1426, %v1274
        %v1435 = vmul.f32 %v1427, %v1275
        %v1436 = vmul.f32 %v1428, %v1276
        %v1437 = vmul.f32 %v1429, %v1277
        %v1438 = vmul.f32 %v1430, %v1278
        %v1439 = vmul.f32 %v1431, %v1279
        %v1440 = vadd.f32 %v1432, -0.001682827
        %v1441 = vadd.f32 %v1433, -0.001682827
        %v1442 = vadd.f32 %v1434, -0.001682827
        %v1443 = vadd.f32 %v1435, -0.001682827
        %v1444 = vadd.f32 %v1436, -0.001682827
        %v1445 = vadd.f32 %v1437, -0.001682827
        %v1446 = vadd.f32 %v1438, -0.001682827
        %v1447 = vadd.f32 %v1439, -0.001682827
        %v1448 = vmul.f32 %v1440, %v1272
        %v1449 = vmul.f32 %v1441, %v1273
        %v1450 = vmul.f32 %v1442, %v1274
        %v1451 = vmul.f32 %v1443, %v1275
        %v1452 = vmul.f32 %v1444, %v1276
        %v1453 = vmul.f32 %v1445, %v1277
        %v1454 = vmul.f32 %v1446, %v1278
        %v1455 = vmul.f32 %v1447, %v1279
        %v1456 = vadd.f32 %v1448, -0.0073733293
        %v1457 = vadd.f32 %v1449, -0.0073733293
        %v1458 = vadd.f32 %v1450, -0.0073733293
        %v1459 = vadd.f32 %v1451, -0.0073733293
        %v1460 = vadd.f32 %v1452, -0.0073733293
        %v1461 = vadd.f32 %v1453, -0.0073733293
        %v1462 = vadd.f32 %v1454, -0.0073733293
        %v1463 = vadd.f32 %v1455, -0.0073733293
        %v1464 = vmul.f32 %v1456, %v1272
        %v1465 = vmul.f32 %v1457, %v1273
        %v1466 = vmul.f32 %v1458, %v1274
        %v1467 = vmul.f32 %v1459, %v1275
        %v1468 = vmul.f32 %v1460, %v1276
        %v1469 = vmul.f32 %v1461, %v1277
        %v1470 = vmul.f32 %v1462, %v1278
        %v1471 = vmul.f32 %v1463, %v1279
        %v1472 = vadd.f32 %v1464, -0.014264739
        %v1473 = vadd.f32 %v1465, -0.014264739
        %v1474 = vadd.f32 %v1466, -0.014264739
        %v1475 = vadd.f32 %v1467, -0.014264739
        %v1476 = vadd.f32 %v1468, -0.014264739
        %v1477 = vadd.f32 %v1469, -0.014264739
        %v1478 = vadd.f32 %v1470, -0.014264739
        %v1479 = vadd.f32 %v1471, -0.014264739
        %v1480 = vrcp.pop %v1472
        %v1481 = vmul.f32 %v1376, %v1480
        %v1482 = vrcp.pop %v1473
        %v1483 = vmul.f32 %v1377, %v1482
        %v1484 = vrcp.pop %v1474
        %v1485 = vmul.f32 %v1378, %v1484
        %v1486 = vrcp.pop %v1475
        %v1487 = vmul.f32 %v1379, %v1486
        %v1488 = vrcp.pop %v1476
        %v1489 = vmul.f32 %v1380, %v1488
        %v1490 = vrcp.pop %v1477
        %v1491 = vmul.f32 %v1381, %v1490
        %v1492 = vrcp.pop %v1478
        %v1493 = vmul.f32 %v1382, %v1492
        %v1494 = vrcp.pop %v1479
        %v1495 = vmul.f32 %v1383, %v1494
        %v1496 = vadd.f32 %v1481, 1.0
        %v1497 = vadd.f32 %v1483, 1.0
        %v1498 = vadd.f32 %v1485, 1.0
        %v1499 = vadd.f32 %v1487, 1.0
        %v1500 = vadd.f32 %v1489, 1.0
        %v1501 = vadd.f32 %v1491, 1.0
        %v1502 = vadd.f32 %v1493, 1.0
        %v1503 = vadd.f32 %v1495, 1.0
        %v1504 = vmul.f32 %v1240, %v1496
        %v1505 = vmul.f32 %v1241, %v1497
        %v1506 = vmul.f32 %v1242, %v1498
        %v1507 = vmul.f32 %v1243, %v1499
        %v1508 = vmul.f32 %v1244, %v1500
        %v1509 = vmul.f32 %v1245, %v1501
        %v1510 = vmul.f32 %v1246, %v1502
        %v1511 = vmul.f32 %v1247, %v1503
        %v1512 = vpack.c.bf16 %v1505, %v1504
        %v1513 = vpack.c.bf16 %v1507, %v1506
        %v1514 = vpack.c.bf16 %v1509, %v1508
        %v1515 = vpack.c.bf16 %v1511, %v1510
        %v1517 = vsel %vm427, %v1512, 0
        %v1520 = vsel %vm427, %v1513, 0
        %v1523 = vsel %vm427, %v1514, 0
        %v1526 = vsel %vm427, %v1515, 0
        %1528 = vmatprep.subr.bf16.mxu0 0
        %1529 = vmatpush1.bf16.msra.mxu0 0
        %1530 = vmatprep.subr.bf16.mxu0 0
        %1531 = vmatpush1.bf16.msra.mxu0 0
        %1532 = vmatprep.subr.bf16.mxu0 0
        %1533 = vmatpush1.bf16.msra.mxu0 0
        %1534 = vmatprep.subr.bf16.mxu0 0
        %1535 = vmatpush1.bf16.msra.mxu0 0
        %1536 = vmatprep.subr.bf16.mxu0 0
        %1537 = vmatpush1.bf16.msra.mxu0 0
        %1538 = vmatprep.subr.bf16.mxu0 0
        %1539 = vmatpush1.bf16.msra.mxu0 0
        %1540 = vmatprep.subr.bf16.mxu0 0
        %1541 = vmatpush1.bf16.msra.mxu0 %v951
        %1542 = vmatprep.subr.bf16.mxu0 0
        %1543 = vmatpush1.bf16.msra.mxu0 %v950
        %1544 = vmatprep.subr.bf16.mxu0 0
        %1545 = vmatpush2.bf16.msra.mxu0 0
        %1546 = vmatprep.subr.bf16.mxu0 0
        %1547 = vmatpush2.bf16.msra.mxu0 0
        %1548 = vmatprep.subr.bf16.mxu0 0
        %1549 = vmatpush2.bf16.msra.mxu0 0
        %1550 = vmatprep.subr.bf16.mxu0 0
        %1551 = vmatpush2.bf16.msra.mxu0 0
        %1552 = vmatprep.subr.bf16.mxu0 0
        %1553 = vmatpush2.bf16.msra.mxu0 0
        %1554 = vmatprep.subr.bf16.mxu0 0
        %1555 = vmatpush2.bf16.msra.mxu0 0
        %1556 = vmatprep.subr.bf16.mxu0 0
        %1557 = vmatpush2.bf16.msra.mxu0 0
        %1558 = vmatprep.subr.bf16.mxu0 0
        %1559 = vmatpush2.bf16.msra.mxu0 0
        %1560 = vmatprep.mubr.bf16.mxu0 0
        %1561 = vmatmul.mubr.bf16.gmra.mxu0 %v1517
        %v1562 = vpop.f32.mrf.mxu0
        %v1563 = vadd.f32 %v940, %v1562
        %v1564 = vpop.f32.mrf.mxu0
        %v1565 = vpop.f32.mrf.mxu0
        %v1566 = vadd.f32 %v940, %v1565
        %v1567 = vpop.f32.mrf.mxu0
        %1568 = vmatprep.mubr.bf16.mxu0 0
        %1569 = vmatmul.mubr.bf16.gmra.mxu0 %v1520
        %v1570 = vpop.f32.mrf.mxu0
        %v1571 = vadd.f32 %v940, %v1570
        %v1572 = vpop.f32.mrf.mxu0
        %v1573 = vpop.f32.mrf.mxu0
        %v1574 = vadd.f32 %v940, %v1573
        %v1575 = vpop.f32.mrf.mxu0
        %1576 = vmatprep.mubr.bf16.mxu0 0
        %1577 = vmatmul.mubr.bf16.gmra.mxu0 %v1523
        %v1578 = vpop.f32.mrf.mxu0
        %v1579 = vadd.f32 %v940, %v1578
        %v1580 = vpop.f32.mrf.mxu0
        %v1581 = vpop.f32.mrf.mxu0
        %v1582 = vadd.f32 %v940, %v1581
        %v1583 = vpop.f32.mrf.mxu0
        %1584 = vmatprep.mubr.bf16.mxu0 0
        %1585 = vmatmul.mubr.bf16.gmra.mxu0 %v1526
        %v1586 = vpop.f32.mrf.mxu0
        %v1587 = vadd.f32 %v940, %v1586
        %v1588 = vpop.f32.mrf.mxu0
        %v1589 = vpop.f32.mrf.mxu0
        %v1590 = vadd.f32 %v940, %v1589
        %v1591 = vpop.f32.mrf.mxu0
        %1592 = vdwg.mxu0
        %v1601 = vrot.slane %v1566, 7
        %vm1602 = vcmask 1041409
        %v1603 = vsel %vm1602, %v1601, %v1563
        %v1604 = vrot.slane %v1571, 6
        %vm1605 = vcmask 1042434
        %v1606 = vsel %vm1605, %v1604, %v1603
        %v1607 = vrot.slane %v1574, 5
        %vm1608 = vcmask 1043459
        %v1609 = vsel %vm1608, %v1607, %v1606
        %v1610 = vrot.slane %v1579, 4
        %vm1611 = vcmask 1044484
        %v1612 = vsel %vm1611, %v1610, %v1609
        %v1613 = vrot.slane %v1582, 3
        %vm1614 = vcmask 1045509
        %v1615 = vsel %vm1614, %v1613, %v1612
        %v1616 = vrot.slane %v1587, 2
        %vm1617 = vcmask 1046534
        %v1618 = vsel %vm1617, %v1616, %v1615
        %v1619 = vrot.slane %v1590, 1
        %vm1620 = vcmask 1047559
        %v1621 = vsel %vm1620, %v1619, %v1618
        %v1623 = vadd.f32 %v1001, %v1621
        %vm1624 = vcmask 130048
        %1625 = vst.msk [vmem:[%s402] sm:$0xff] %vm1624, %v1623
        %v1626 = vrot.slane %v1563, 1
        %v1627 = vsel %vm1602, %v1566, %v1626
        %v1628 = vrot.slane %v1571, 7
        %v1629 = vsel %vm1605, %v1628, %v1627
        %v1630 = vrot.slane %v1574, 6
        %v1631 = vsel %vm1608, %v1630, %v1629
        %v1632 = vrot.slane %v1579, 5
        %v1633 = vsel %vm1611, %v1632, %v1631
        %v1634 = vrot.slane %v1582, 4
        %v1635 = vsel %vm1614, %v1634, %v1633
        %v1636 = vrot.slane %v1587, 3
        %v1637 = vsel %vm1617, %v1636, %v1635
        %v1638 = vrot.slane %v1590, 2
        %v1639 = vsel %vm1620, %v1638, %v1637
        %v1641 = vadd.f32 %v1004, %v1639
        %s1642 = scalar_lea.vmem %s402, 8 [#allocation7]
        %1643 = vst.msk [vmem:[%s1642] sm:$0xff] %vm1624, %v1641
        %v1644 = vrot.slane %v1563, 2
        %v1645 = vrot.slane %v1566, 1
        %v1646 = vsel %vm1602, %v1645, %v1644
        %v1647 = vsel %vm1605, %v1571, %v1646
        %v1648 = vrot.slane %v1574, 7
        %v1649 = vsel %vm1608, %v1648, %v1647
        %v1650 = vrot.slane %v1579, 6
        %v1651 = vsel %vm1611, %v1650, %v1649
        %v1652 = vrot.slane %v1582, 5
        %v1653 = vsel %vm1614, %v1652, %v1651
        %v1654 = vrot.slane %v1587, 4
        %v1655 = vsel %vm1617, %v1654, %v1653
        %v1656 = vrot.slane %v1590, 3
        %v1657 = vsel %vm1620, %v1656, %v1655
        %v1659 = vadd.f32 %v1009, %v1657
        %s1660 = scalar_lea.vmem %s402, 16 [#allocation7]
        %1661 = vst.msk [vmem:[%s1660] sm:$0xff] %vm1624, %v1659
        %v1662 = vrot.slane %v1563, 3
        %v1663 = vrot.slane %v1566, 2
        %v1664 = vsel %vm1602, %v1663, %v1662
        %v1665 = vrot.slane %v1571, 1
        %v1666 = vsel %vm1605, %v1665, %v1664
        %v1667 = vsel %vm1608, %v1574, %v1666
        %v1668 = vrot.slane %v1579, 7
        %v1669 = vsel %vm1611, %v1668, %v1667
        %v1670 = vrot.slane %v1582, 6
        %v1671 = vsel %vm1614, %v1670, %v1669
        %v1672 = vrot.slane %v1587, 5
        %v1673 = vsel %vm1617, %v1672, %v1671
        %v1674 = vrot.slane %v1590, 4
        %v1675 = vsel %vm1620, %v1674, %v1673
        %v1677 = vadd.f32 %v1012, %v1675
        %s1678 = scalar_lea.vmem %s402, 24 [#allocation7]
        %1679 = vst.msk [vmem:[%s1678] sm:$0xff] %vm1624, %v1677
        %v1680 = vrot.slane %v1563, 4
        %v1681 = vrot.slane %v1566, 3
        %v1682 = vsel %vm1602, %v1681, %v1680
        %v1683 = vrot.slane %v1571, 2
        %v1684 = vsel %vm1605, %v1683, %v1682
        %v1685 = vrot.slane %v1574, 1
        %v1686 = vsel %vm1608, %v1685, %v1684
        %v1687 = vsel %vm1611, %v1579, %v1686
        %v1688 = vrot.slane %v1582, 7
        %v1689 = vsel %vm1614, %v1688, %v1687
        %v1690 = vrot.slane %v1587, 6
        %v1691 = vsel %vm1617, %v1690, %v1689
        %v1692 = vrot.slane %v1590, 5
        %v1693 = vsel %vm1620, %v1692, %v1691
        %v1695 = vadd.f32 %v1017, %v1693
        %s1696 = scalar_lea.vmem %s402, 32 [#allocation7]
        %1697 = vst.msk [vmem:[%s1696] sm:$0xff] %vm1624, %v1695
        %v1698 = vrot.slane %v1563, 5
        %v1699 = vrot.slane %v1566, 4
        %v1700 = vsel %vm1602, %v1699, %v1698
        %v1701 = vrot.slane %v1571, 3
        %v1702 = vsel %vm1605, %v1701, %v1700
        %v1703 = vrot.slane %v1574, 2
        %v1704 = vsel %vm1608, %v1703, %v1702
        %v1705 = vrot.slane %v1579, 1
        %v1706 = vsel %vm1611, %v1705, %v1704
        %v1707 = vsel %vm1614, %v1582, %v1706
        %v1708 = vrot.slane %v1587, 7
        %v1709 = vsel %vm1617, %v1708, %v1707
        %v1710 = vrot.slane %v1590, 6
        %v1711 = vsel %vm1620, %v1710, %v1709
        %v1713 = vadd.f32 %v1020, %v1711
        %s1714 = scalar_lea.vmem %s402, 40 [#allocation7]
        %1715 = vst.msk [vmem:[%s1714] sm:$0xff] %vm1624, %v1713
        %v1716 = vrot.slane %v1563, 6
        %v1717 = vrot.slane %v1566, 5
        %v1718 = vsel %vm1602, %v1717, %v1716
        %v1719 = vrot.slane %v1571, 4
        %v1720 = vsel %vm1605, %v1719, %v1718
        %v1721 = vrot.slane %v1574, 3
        %v1722 = vsel %vm1608, %v1721, %v1720
        %v1723 = vrot.slane %v1579, 2
        %v1724 = vsel %vm1611, %v1723, %v1722
        %v1725 = vrot.slane %v1582, 1
        %v1726 = vsel %vm1614, %v1725, %v1724
        %v1727 = vsel %vm1617, %v1587, %v1726
        %v1728 = vrot.slane %v1590, 7
        %v1729 = vsel %vm1620, %v1728, %v1727
        %v1731 = vadd.f32 %v1025, %v1729
        %s1732 = scalar_lea.vmem %s402, 48 [#allocation7]
        %1733 = vst.msk [vmem:[%s1732] sm:$0xff] %vm1624, %v1731
        %v1734 = vrot.slane %v1563, 7
        %v1735 = vrot.slane %v1566, 6
        %v1736 = vsel %vm1602, %v1735, %v1734
        %v1737 = vrot.slane %v1571, 5
        %v1738 = vsel %vm1605, %v1737, %v1736
        %v1739 = vrot.slane %v1574, 4
        %v1740 = vsel %vm1608, %v1739, %v1738
        %v1741 = vrot.slane %v1579, 3
        %v1742 = vsel %vm1611, %v1741, %v1740
        %v1743 = vrot.slane %v1582, 2
        %v1744 = vsel %vm1614, %v1743, %v1742
        %v1745 = vrot.slane %v1587, 1
        %v1746 = vsel %vm1617, %v1745, %v1744
        %v1747 = vsel %vm1620, %v1590, %v1746
        %v1749 = vadd.f32 %v1028, %v1747
        %s1750 = scalar_lea.vmem %s402, 56 [#allocation7]
        %1751 = vst.msk [vmem:[%s1750] sm:$0xff] %vm1624, %v1749
        %s1752 = sand.u32 %s245, 1
        %s1753 = scalar_lea.sflag [#allocation4], %s1752
        %s1754 = sand.u32 %s245, 1
        %s1755 = smul.addr %s1754, 64
        %s1756 = scalar_lea.vmem [#allocation7], %s1755
        // Predicated region
        $region61: #{distogram_head.1} parent=51 // pred_check
          %p1757 = pneg %p255
        $region62: #{distogram_head.1} parent=51 // pred_check_branch
          %1759 = sbr.rel (%p1757) target = $region64
        $region63: #{distogram_head.1} parent=51 // pred_region
          %s1760 = smul.u32 8, %s34
          %s1762 = ssub.s32 1024, 1024
          %1763 = vsyncadd %s1753, %s1762
          %s1764 = smul.addr %s1760, 2
          %s1765 = sadd.s32 %s35, %s1764
          %s1766 = smul.addr %s33, 32
          %s1767 = sadd.s32 %s1765, %s1766
          %s1768 = smul.addr %s1767, 128
          %s1769 = scalar_lea.hbm %s8, %s1768
          %s1770 = sshll.u32 %s1756, 4
          %s1771 = int_to_ptr.vmem [resolvable:$true] %s1770
          %1776 = dma.vmem_to_hbm [thread:$0]  %s1771, 1024, %s1769, %s1753, 128, 256, 8
        $region64: #{distogram_head.1} parent=51 // pred_fallthru
          _
      $region52: #{distogram_head.1} parent=5 // pred_fallthru
        _
      %p1777 = scmp.le.s32.totalorder 2, %s23
      // Predicated region
      $region65: #{distogram_head.1} parent=5 // pred_check
        %p1778 = pneg %p1777
      $region66: #{distogram_head.1} parent=5 // pred_check_branch
        %1780 = sbr.rel (%p1778) target = $region68
      $region67: #{distogram_head.1} parent=5 // pred_region
        %s1781 = ssub.s32 %s23, 2
        // Predicated region
        $region69: #{distogram_head.1} parent=67 // pred_check
          %p1782 = pneg %p261
        $region70: #{distogram_head.1} parent=67 // pred_check_branch
          %1784 = sbr.rel (%p1782) target = $region72
        $region71: #{distogram_head.1} parent=67 // pred_region
          %s1785 = sand.u32 %s246, 1
          %s1786 = scalar_lea.sflag [#allocation4], %s1785
          %s1787 = sand.u32 %s246, 1
          %s1788 = smul.addr %s1787, 64
          %s1789 = scalar_lea.vmem [#allocation7], %s1788
          %1790 = dma.done %s1786, 1024
        $region72: #{distogram_head.1} parent=67 // pred_fallthru
          _
      $region68: #{distogram_head.1} parent=5 // pred_fallthru
        _
    $region6: #{distogram_head.1} parent=1 // loop_footer
      %s27 = sadd.s32 1, %s23
    $region7: #{distogram_head.1} parent=1 // loop_footer_branch
      %22 = sbr.rel target = $region3
    $region8: #{distogram_head.1} parent=1 // loop_exit
      _
    %1791 = vsyncpa [#allocation3], 1
    %s1792 = scalar_lea.sflag [#allocation3], 1
    %1793 = vsyncpa %s1792, 1
    %1794 = vsyncpa [#allocation6], 1
    %s1795 = scalar_lea.sflag [#allocation6], 1
    %1796 = vsyncpa %s1795, 1
    %1797 = vsyncpa [#allocation4], 1
    %s1798 = scalar_lea.sflag [#allocation4], 1
    %1799 = vsyncpa %s1798, 1

</llo_original>
